<compile_context>
chip_gen: v6e
topology: v6e:2x2x1
jax: 0.10.0
libtpu: 0.0.40
codegen_flags: <defaults>
</compile_context>

<pallas_src>
import math

import jax
import jax.numpy as jnp
from jax.experimental import pallas as pl
from jax.experimental.pallas import tpu as pltpu


def _round_up(x, m):
    return (x + m - 1) // m * m


_TILE_CANDS = (512, 384, 256, 128)


def _pick_n(n):
    np_ = _round_up(n, 128)
    for t in _TILE_CANDS:
        if np_ % t == 0:
            return np_, t
    return np_, 128


def _pick_k(k):
    # Prefer zero-waste K tiles; otherwise allow up to ~12% zero padding so we
    # don't fall back to tiny 128-wide k steps (MXU underfeed).
    for t in _TILE_CANDS:
        if k % t == 0:
            return k, t
    for t in _TILE_CANDS:
        kp = _round_up(k, t)
        if (kp - k) / kp <= 0.12:
            return kp, t
    return _round_up(k, 128), 128


# ---------------------------------------------------------------------------
# Pallas kernels
# ---------------------------------------------------------------------------
def _make_matmul_kernel(relu):
    def kernel(a_ref, b_ref, bias_ref, o_ref, acc_ref):
        k = pl.program_id(2)

        @pl.when(k == 0)
        def _():
            acc_ref[...] = jnp.zeros_like(acc_ref)

        acc_ref[...] += jnp.dot(
            a_ref[...], b_ref[...], preferred_element_type=jnp.float32
        )

        @pl.when(k == pl.num_programs(2) - 1)
        def _():
            y = acc_ref[...] + bias_ref[...]
            if relu:
                y = jnp.maximum(y, 0.0)
            o_ref[...] = y.astype(o_ref.dtype)

    return kernel


def pallas_matmul_fused(a, p, relu):
    """out = relu?(a @ W + b) with W/b pre-padded bf16/f32 matrices in `p`."""
    M, K = a.shape
    Kp, Np = p["w"].shape
    tk, tn = p["tk"], p["tn"]
    if M >= 512:
        tm = 512
        Mp = _round_up(M, tm)
    else:
        Mp = _round_up(M, 16)  # bf16 sublane-friendly small-M tile
        tm = Mp
    a_p = jnp.pad(a.astype(jnp.bfloat16), ((0, Mp - M), (0, Kp - K)))
    out = pl.pallas_call(
        _make_matmul_kernel(relu),
        out_shape=jax.ShapeDtypeStruct((Mp, Np), jnp.float32),
        grid_spec=pltpu.PrefetchScalarGridSpec(
            num_scalar_prefetch=0,
            grid=(Mp // tm, Np // tn, Kp // tk),
            in_specs=[
                pl.BlockSpec((tm, tk), lambda i, j, k: (i, k)),
                pl.BlockSpec((tk, tn), lambda i, j, k: (k, j)),
                pl.BlockSpec((1, tn), lambda i, j, k: (0, j)),
            ],
            out_specs=pl.BlockSpec((tm, tn), lambda i, j, k: (i, j)),
            scratch_shapes=[pltpu.VMEM((tm, tn), jnp.float32)],
        ),
        compiler_params=pltpu.CompilerParams(
            dimension_semantics=("parallel", "parallel", "arbitrary")
        ),
    )(a_p, p["w"], p["b"])
    return out[:M, : p["n"]]


def _maxpool9_kernel(*refs):
    o_ref = refs[-1]
    m = refs[0][...]
    for r in refs[1:9]:
        m = jnp.maximum(m, r[...])
    o_ref[...] = m


def pallas_maxpool2d_3x3_s2(x):
    """MaxPool2d(kernel_size=3, stride=2, padding=0) on NHWC input.

    The 9 window taps are passed as 9 separate strided views (no stacked
    (9, M, C) intermediate) and reduced inside the kernel.
    """
    N, H, W, C = x.shape
    Ho = (H - 3) // 2 + 1
    Wo = (W - 3) // 2 + 1
    M = N * Ho * Wo
    if M >= 512:
        tm = 512
        Mp = _round_up(M, tm)
    else:
        Mp = _round_up(M, 8)
        tm = Mp
    wins = []
    for kh in range(3):
        for kw in range(3):
            v = x[:, kh : kh + 2 * (Ho - 1) + 1 : 2,
                  kw : kw + 2 * (Wo - 1) + 1 : 2, :].reshape(M, C)
            wins.append(jnp.pad(v, ((0, Mp - M), (0, 0))))
    out = pl.pallas_call(
        _maxpool9_kernel,
        out_shape=jax.ShapeDtypeStruct((Mp, C), x.dtype),
        grid_spec=pltpu.PrefetchScalarGridSpec(
            num_scalar_prefetch=0,
            grid=(Mp // tm,),
            in_specs=[pl.BlockSpec((tm, C), lambda i: (i, 0)) for _ in range(9)],
            out_specs=pl.BlockSpec((tm, C), lambda i: (i, 0)),
        ),
        compiler_params=pltpu.CompilerParams(dimension_semantics=("parallel",)),
    )(*wins)
    return out[:M].reshape(N, Ho, Wo, C)


# ---------------------------------------------------------------------------
# Convolution = im2col (slicing glue, bf16) + fused Pallas matmul epilogue
# ---------------------------------------------------------------------------
def conv2d(x, p, relu=True):
    """x: NHWC f32; conv weight/bias live pre-reshaped/padded/bf16 in `p`."""
    N, H, W, C = x.shape
    KH, KW = p["ksize"]
    s, pad = p["stride"], p["pad"]
    Ho = (H + 2 * pad - KH) // s + 1
    Wo = (W + 2 * pad - KW) // s + 1
    xb = x.astype(jnp.bfloat16)  # halve im2col HBM traffic
    xp = jnp.pad(xb, ((0, 0), (pad, pad), (pad, pad), (0, 0))) if pad else xb
    cols = []
    for kh in range(KH):
        for kw in range(KW):
            cols.append(
                xp[:, kh : kh + s * (Ho - 1) + 1 : s,
                   kw : kw + s * (Wo - 1) + 1 : s, :]
            )
    # TODO(synk): im2col still amplifies activation reads by KH*KW; folding the
    # window offsets into matmul index_maps would remove this but needs a
    # spatially-blocked (Element-offset) spec, kept simple/safe here.
    patches = jnp.concatenate(cols, axis=-1).reshape(N * Ho * Wo, KH * KW * C)
    out = pallas_matmul_fused(patches, p, relu)
    return out.reshape(N, Ho, Wo, p["n"])


# ---------------------------------------------------------------------------
# Parameter init (deterministic, mirrors the PyTorch default inits)
# ---------------------------------------------------------------------------
def _pad_matmul_params(w, b):
    K, N = w.shape
    Kp, tk = _pick_k(K)
    Np, tn = _pick_n(N)
    w_p = jnp.pad(w, ((0, Kp - K), (0, Np - N))).astype(jnp.bfloat16)
    b_p = jnp.pad(b, (0, Np - N)).astype(jnp.float32).reshape(1, Np)
    return {"w": w_p, "b": b_p, "n": N, "k": K, "tk": tk, "tn": tn}


def _init_dense(key, k_in, n_out):
    kw, kb = jax.random.split(key)
    bound = 1.0 / math.sqrt(k_in)
    w = jax.random.uniform(kw, (k_in, n_out), jnp.float32, -bound, bound)
    b = jax.random.uniform(kb, (n_out,), jnp.float32, -bound, bound)
    return w, b


def _prep_conv(key, kh, kw, cin, cout, stride, pad):
    w, b = _init_dense(key, kh * kw * cin, cout)  # (KH*KW*Cin, Cout) layout
    p = _pad_matmul_params(w, b)
    p.update(ksize=(kh, kw), stride=stride, pad=pad)
    return p


def _prep_linear(key, in_f, out_f):
    w, b = _init_dense(key, in_f, out_f)
    return _pad_matmul_params(w, b)


def init_alexnet_params(key, num_bins=66):
    ks = jax.random.split(key, 10)
    params = {"num_bins": num_bins}
    params["conv1"] = _prep_conv(ks[0], 11, 11, 3, 64, stride=4, pad=2)
    params["conv2"] = _prep_conv(ks[1], 5, 5, 64, 192, stride=1, pad=2)
    params["conv3"] = _prep_conv(ks[2], 3, 3, 192, 384, stride=1, pad=1)
    params["conv4"] = _prep_conv(ks[3], 3, 3, 384, 256, stride=1, pad=1)
    params["conv5"] = _prep_conv(ks[4], 3, 3, 256, 256, stride=1, pad=1)
    params["fc1"] = _prep_linear(ks[5], 256 * 6 * 6, 4096)
    params["fc2"] = _prep_linear(ks[6], 4096, 4096)
    # fc_yaw / fc_pitch / fc_roll fused into one GEMM, split afterwards.
    hw, hb = [], []
    for hk in (ks[7], ks[8], ks[9]):
        w, b = _init_dense(hk, 4096, num_bins)
        hw.append(w)
        hb.append(b)
    params["heads"] = _pad_matmul_params(
        jnp.concatenate(hw, axis=1), jnp.concatenate(hb)
    )
    return params


# ---------------------------------------------------------------------------
# Forward pass
# ---------------------------------------------------------------------------
def alexnet_forward(params, x_nchw):
    # layout: x_nchw is (N, 3, H, W) like PyTorch; compute in NHWC internally.
    x = jnp.transpose(x_nchw, (0, 2, 3, 1)).astype(jnp.float32)
    x = conv2d(x, params["conv1"], relu=True)
    x = pallas_maxpool2d_3x3_s2(x)
    x = conv2d(x, params["conv2"], relu=True)
    x = pallas_maxpool2d_3x3_s2(x)
    x = conv2d(x, params["conv3"], relu=True)
    x = conv2d(x, params["conv4"], relu=True)
    x = conv2d(x, params["conv5"], relu=True)
    x = pallas_maxpool2d_3x3_s2(x)
    N = x.shape[0]
    # PyTorch's view is on an NCHW tensor -> transpose back before flattening.
    feat = jnp.transpose(x, (0, 3, 1, 2)).reshape(N, 256 * 6 * 6)
    # nn.Dropout treated as inference-mode identity.
    h = pallas_matmul_fused(feat, params["fc1"], relu=True)
    h = pallas_matmul_fused(h, params["fc2"], relu=True)
    logits = pallas_matmul_fused(h, params["heads"], relu=False)  # (N, 3*num_bins)
    nb = params["num_bins"]
    yaw = logits[:, :nb]
    pitch = logits[:, nb : 2 * nb]
    roll = logits[:, 2 * nb : 3 * nb]
    return yaw, pitch, roll


if __name__ == "__main__":
    key = jax.random.PRNGKey(0)
    kparam, kx = jax.random.split(key)
    NUM_BINS = 66
    params = init_alexnet_params(kparam, num_bins=NUM_BINS)
    # 224x224 input: required so the feature map is exactly 6x6 for the
    # hard-coded Linear(256*6*6, 4096) in the classifier. Batch kept small (2).
    x = jax.random.normal(kx, (2, 3, 224, 224), jnp.float32)
    yaw, pitch, roll = alexnet_forward(params, x)
    jax.block_until_ready((yaw, pitch, roll))
    assert yaw.shape == (2, NUM_BINS)
    assert pitch.shape == (2, NUM_BINS)
    assert roll.shape == (2, NUM_BINS)
    assert bool(jnp.all(jnp.isfinite(yaw)))
    assert bool(jnp.all(jnp.isfinite(pitch)))
    assert bool(jnp.all(jnp.isfinite(roll)))
    print("KERNEL_OK")
</pallas_src>

<mosaic_0001>
module attributes {stable_mosaic.version = 11 : i64} {
  func.func @kernel(%arg0: i32, %arg1: i32, %arg2: i32, %arg3: memref<512x384xbf16, #tpu.memory_space<vmem>>, %arg4: memref<384x128xbf16, #tpu.memory_space<vmem>>, %arg5: memref<1x128xf32, #tpu.memory_space<vmem>>, %arg6: memref<512x128xf32, #tpu.memory_space<vmem>>, %arg7: memref<512x128xf32, #tpu.memory_space<vmem>>) attributes {dimension_semantics = [#tpu.dimension_semantics<parallel>, #tpu.dimension_semantics<parallel>, #tpu.dimension_semantics<arbitrary>], iteration_bounds = array<i64: 12, 1, 1>, scalar_prefetch = 0 : i64, scratch_operands = 1 : i64, tpu.core_type = #tpu.core_type<tc>, window_params = [{transform_indices = @transform_0, window_bounds = array<i64: 512, 384>}, {transform_indices = @transform_1, window_bounds = array<i64: 384, 128>}, {transform_indices = @transform_2, window_bounds = array<i64: 1, 128>}, {transform_indices = @transform_3, window_bounds = array<i64: 512, 128>}]} {
    %c0_i32 = arith.constant 0 : i32
    %0 = arith.cmpi eq, %arg2, %c0_i32 : i32
    %1 = arith.extui %0 : i1 to i32
    %c0_i32_0 = arith.constant 0 : i32
    %2 = arith.cmpi ne, %1, %c0_i32_0 : i32
    scf.if %2 {
      %cst_10 = arith.constant 0.000000e+00 : f32
      %12 = vector.broadcast %cst_10 : f32 to vector<512x128xf32>
      %c0_11 = arith.constant 0 : index
      %c0_12 = arith.constant 0 : index
      %13 = vector.load %arg7[%c0_11, %c0_12] : memref<512x128xf32, #tpu.memory_space<vmem>>, vector<512x128xf32>
      tpu.vector_store %arg7[%c0_11, %c0_12], %12 {strides = array<i32>} : memref<512x128xf32, #tpu.memory_space<vmem>>, vector<512x128xf32>,
    } else {
    }
    %c0 = arith.constant 0 : index
    %c0_1 = arith.constant 0 : index
    %3 = vector.load %arg7[%c0, %c0_1] : memref<512x128xf32, #tpu.memory_space<vmem>>, vector<512x128xf32>
    %c0_2 = arith.constant 0 : index
    %c0_3 = arith.constant 0 : index
    %4 = vector.load %arg3[%c0_2, %c0_3] : memref<512x384xbf16, #tpu.memory_space<vmem>>, vector<512x384xbf16>
    %c0_4 = arith.constant 0 : index
    %c0_5 = arith.constant 0 : index
    %5 = vector.load %arg4[%c0_4, %c0_5] : memref<384x128xbf16, #tpu.memory_space<vmem>>, vector<384x128xbf16>
    %cst = arith.constant dense<0.000000e+00> : vector<512x128xf32>
    %6 = tpu.matmul %4, %5, %cst {dimension_numbers = #tpu.dot_dimension_numbers<[1], [0], [0], [1], [0, 0, 1, 1], [], []>} : vector<512x384xbf16>, vector<384x128xbf16>, vector<512x128xf32> -> vector<512x128xf32>
    %7 = arith.addf %3, %6 : vector<512x128xf32>
    %c0_6 = arith.constant 0 : index
    %c0_7 = arith.constant 0 : index
    %8 = vector.load %arg7[%c0_6, %c0_7] : memref<512x128xf32, #tpu.memory_space<vmem>>, vector<512x128xf32>
    tpu.vector_store %arg7[%c0_6, %c0_7], %7 {strides = array<i32>} : memref<512x128xf32, #tpu.memory_space<vmem>>, vector<512x128xf32>,
    %c0_i32_8 = arith.constant 0 : i32
    %9 = arith.cmpi eq, %arg2, %c0_i32_8 : i32
    %10 = arith.extui %9 : i1 to i32
    %c0_i32_9 = arith.constant 0 : i32
    %11 = arith.cmpi ne, %10, %c0_i32_9 : i32
    scf.if %11 {
      %c0_10 = arith.constant 0 : index
      %c0_11 = arith.constant 0 : index
      %12 = vector.load %arg7[%c0_10, %c0_11] : memref<512x128xf32, #tpu.memory_space<vmem>>, vector<512x128xf32>
      %c0_12 = arith.constant 0 : index
      %c0_13 = arith.constant 0 : index
      %13 = vector.load %arg5[%c0_12, %c0_13] : memref<1x128xf32, #tpu.memory_space<vmem>>, vector<1x128xf32>
      %14 = vector.broadcast %13 : vector<1x128xf32> to vector<512x128xf32>
      %15 = arith.addf %12, %14 : vector<512x128xf32>
      %cst_14 = arith.constant 0.000000e+00 : f32
      %16 = vector.broadcast %cst_14 : f32 to vector<512x128xf32>
      %17 = arith.maximumf %15, %16 : vector<512x128xf32>
      %c0_15 = arith.constant 0 : index
      %c0_16 = arith.constant 0 : index
      %18 = vector.load %arg6[%c0_15, %c0_16] : memref<512x128xf32, #tpu.memory_space<vmem>>, vector<512x128xf32>
      tpu.vector_store %arg6[%c0_15, %c0_16], %17 {strides = array<i32>} : memref<512x128xf32, #tpu.memory_space<vmem>>, vector<512x128xf32>,
    } else {
    }
    return
  }
  func.func @transform_0(%arg0: i32, %arg1: i32, %arg2: i32) -> (i32, i32) {
    %c0_i32 = arith.constant 0 : i32
    return %arg0, %arg2 : i32, i32
  }
  func.func @transform_1(%arg0: i32, %arg1: i32, %arg2: i32) -> (i32, i32) {
    %c0_i32 = arith.constant 0 : i32
    return %arg2, %arg1 : i32, i32
  }
  func.func @transform_2(%arg0: i32, %arg1: i32, %arg2: i32) -> (i32, i32) {
    %c0_i32 = arith.constant 0 : i32
    %c0_i32_0 = arith.constant 0 : i32
    return %c0_i32, %arg1 : i32, i32
  }
  func.func @transform_3(%arg0: i32, %arg1: i32, %arg2: i32) -> (i32, i32) {
    %c0_i32 = arith.constant 0 : i32
    return %arg0, %arg1 : i32, i32
  }
}

</mosaic_0001>

<llo_original>
// kernel: tpu_custom_call.1
$region0: #{tpu_custom_call.1}
  #allocation0 [shape = 'u32[]', space=smem, size = 0x4, offset = 0x4, fixed_abs, tag = 'smem constant byte address 0x4 - core index']
  #allocation1 [shape = 'u32[144,128]{1,0:T(1,128)}', space=vmem, size = 0x12000, scoped, tag = 'internal scratch']
  #allocation2 [shape = 'f32[512,128]{1,0:T(8,128)}', space=vmem, size = 0x40000, scoped, tag = 'scratch operand']
  %s0 = inlined_call_operand.hbm [shape: bf16[6144,384], index: 0, kind: input, shape index: {}]
  %s1 = inlined_call_operand.hbm [shape: bf16[384,128], index: 1, kind: input, shape index: {}]
  %s2 = inlined_call_operand.hbm [shape: f32[1,128], index: 2, kind: input, shape index: {}]
  %s3 = inlined_call_operand.hbm [shape: f32[6144,128], index: 3, kind: output, shape index: {}]
  %s4 = sld [smem:[#allocation0]]
  $region65: #{tpu_custom_call.1} parent=0
    _
  %s6 = ssub.s32 1, %s4
  %s7 = scalar_select 0, %s6, %s4
  $region1: #{tpu_custom_call.1} parent=0
    #allocation3 [shape = 'u8[786432]{0}', space=vmem, size = 0xc0000, scoped, tag = 'input window, operand 0']
    #allocation4 [shape = 's32[2]{0}', space=sflag, size = 0x8, scoped, tag = 'scoped memory for tpu_custom_call.1']
    #allocation5 [shape = 's32[2]{0}', space=sflag, size = 0x8, scoped, tag = 'scoped memory for tpu_custom_call.1']
    #allocation6 [shape = 'u8[98304]{0}', space=vmem, size = 0x18000, scoped, tag = 'input window, operand 1, single buffered']
    #allocation7 [shape = 's32[1]{0}', space=sflag, size = 0x4, scoped, tag = 'scoped memory for tpu_custom_call.1']
    #allocation8 [shape = 'u8[512]{0}', space=vmem, size = 0x400, scoped, tag = 'input window, operand 2, single buffered']
    #allocation9 [shape = 'u8[524288]{0}', space=vmem, size = 0x80000, scoped, tag = 'output window, operand 0']
    %8 = vsyncpa [#allocation4], 0
    %s9 = scalar_lea.sflag [#allocation4], 1
    %10 = vsyncpa %s9, 0
    %11 = vsyncpa [#allocation7], 0
    %12 = vsyncpa [#allocation5], 0
    %s13 = scalar_lea.sflag [#allocation5], 1
    %14 = vsyncpa %s13, 0
    loop: start=0, step=1, limit=14
    $region2: #{tpu_custom_call.1} parent=1 // loop_pre_header
      _
    $region3: #{tpu_custom_call.1} parent=1 // loop_header
      %s16 = sphi 0, %s20
      %p17 = scmp.ge.s32.totalorder %s16, 14
      %s23 = sphi 0, %s42
      %s24 = sphi 0, %s38
      %s25 = sphi 0, %s34
      %s26 = sphi 0, %s23
      %s27 = sphi 0, %s24
      %s28 = sphi 0, %s25
      %s29 = sphi 0, %s26
      %s30 = sphi 0, %s27
      %s31 = sphi 0, %s28
      %s47 = sphi 0, %s49
      %s50 = sphi 0, %s47
      %s51 = sphi 0, %s50
      %s67 = sphi 0, %s51
      %s75 = sphi 0, %s77
      %s78 = sphi 0, %s75
      %s79 = sphi 0, %s78
      %s95 = sphi 0, %s79
      %s101 = sphi 0, %s103
      %s104 = sphi 0, %s101
      %s105 = sphi 0, %s104
      %s121 = sphi 0, %s105
      %s129 = sphi 0, %s131
      %s132 = sphi 0, %s129
      %s133 = sphi 0, %s132
      %s149 = sphi 0, %s133
    $region4: #{tpu_custom_call.1} parent=1 // loop_header_branch
      %19 = sbr.rel (%p17) target = $region8
    $region5: #{tpu_custom_call.1} parent=1 // loop_body
      %s21 = ssub.s32 %s16, 1
      %s22 = ssub.s32 %s16, 2
      %s32 = sadd.s32 1, %s25
      %p33 = scmp.ge.s32.totalorder %s32, 1
      %s34 = scalar_select %p33, 0, %s32
      %s35 = sadd.s32 1, %s24
      %s36 = scalar_select %p33, %s35, %s24
      %p37 = scmp.ge.s32.totalorder %s36, 1
      %s38 = scalar_select %p37, 0, %s36
      %s39 = sadd.s32 1, %s23
      %s40 = scalar_select %p37, %s39, %s23
      %p41 = scmp.ge.s32.totalorder %s40, 12
      %s42 = scalar_select %p41, 0, %s40
      %s43 = ssub.s32 %s23, %s42
      %s44 = ssub.s32 %s25, %s34
      %s45 = sor.u32 %s43, %s44
      %p46 = scmp.eq.s32.totalorder %s45, 0
      %s48 = sadd.s32 %s47, 1
      %s49 = scalar_select %p46, %s47, %s48
      %p52 = pneg %p46
      %p53 = scmp.eq.s32.totalorder %s16, 11
      %p54 = por %p52, %p53
      %p55 = scmp.ne.s32.totalorder %s47, %s50
      %p56 = scmp.eq.s32.totalorder %s16, 0
      %p57 = por %p55, %p56
      %p58 = scmp.ne.s32.totalorder %s47, %s50
      %p59 = scmp.eq.s32.totalorder %s21, 11
      %p60 = por %p58, %p59
      %p61 = scmp.ne.s32.totalorder %s50, %s51
      %p62 = scmp.eq.s32.totalorder %s21, 0
      %p63 = por %p61, %p62
      %p64 = scmp.ne.s32.totalorder %s50, %s51
      %p65 = scmp.eq.s32.totalorder %s22, 11
      %p66 = por %p64, %p65
      %p68 = scmp.ne.s32.totalorder %s51, %s67
      %p69 = scmp.eq.s32.totalorder %s22, 0
      %p70 = por %p68, %p69
      %s71 = ssub.s32 %s25, %s34
      %s72 = ssub.s32 %s24, %s38
      %s73 = sor.u32 %s71, %s72
      %p74 = scmp.eq.s32.totalorder %s73, 0
      %s76 = sadd.s32 %s75, 1
      %s77 = scalar_select %p74, %s75, %s76
      %p80 = pneg %p74
      %p81 = scmp.eq.s32.totalorder %s16, 11
      %p82 = por %p80, %p81
      %p83 = scmp.ne.s32.totalorder %s75, %s78
      %p84 = scmp.eq.s32.totalorder %s16, 0
      %p85 = por %p83, %p84
      %p86 = scmp.ne.s32.totalorder %s75, %s78
      %p87 = scmp.eq.s32.totalorder %s21, 11
      %p88 = por %p86, %p87
      %p89 = scmp.ne.s32.totalorder %s78, %s79
      %p90 = scmp.eq.s32.totalorder %s21, 0
      %p91 = por %p89, %p90
      %p92 = scmp.ne.s32.totalorder %s78, %s79
      %p93 = scmp.eq.s32.totalorder %s22, 11
      %p94 = por %p92, %p93
      %p96 = scmp.ne.s32.totalorder %s79, %s95
      %p97 = scmp.eq.s32.totalorder %s22, 0
      %p98 = por %p96, %p97
      %s99 = ssub.s32 %s24, %s38
      %p100 = scmp.eq.s32.totalorder %s99, 0
      %s102 = sadd.s32 %s101, 1
      %s103 = scalar_select %p100, %s101, %s102
      %p106 = pneg %p100
      %p107 = scmp.eq.s32.totalorder %s16, 11
      %p108 = por %p106, %p107
      %p109 = scmp.ne.s32.totalorder %s101, %s104
      %p110 = scmp.eq.s32.totalorder %s16, 0
      %p111 = por %p109, %p110
      %p112 = scmp.ne.s32.totalorder %s101, %s104
      %p113 = scmp.eq.s32.totalorder %s21, 11
      %p114 = por %p112, %p113
      %p115 = scmp.ne.s32.totalorder %s104, %s105
      %p116 = scmp.eq.s32.totalorder %s21, 0
      %p117 = por %p115, %p116
      %p118 = scmp.ne.s32.totalorder %s104, %s105
      %p119 = scmp.eq.s32.totalorder %s22, 11
      %p120 = por %p118, %p119
      %p122 = scmp.ne.s32.totalorder %s105, %s121
      %p123 = scmp.eq.s32.totalorder %s22, 0
      %p124 = por %p122, %p123
      %s125 = ssub.s32 %s23, %s42
      %s126 = ssub.s32 %s24, %s38
      %s127 = sor.u32 %s125, %s126
      %p128 = scmp.eq.s32.totalorder %s127, 0
      %s130 = sadd.s32 %s129, 1
      %s131 = scalar_select %p128, %s129, %s130
      %p134 = pneg %p128
      %p135 = scmp.eq.s32.totalorder %s16, 11
      %p136 = por %p134, %p135
      %p137 = scmp.ne.s32.totalorder %s129, %s132
      %p138 = scmp.eq.s32.totalorder %s16, 0
      %p139 = por %p137, %p138
      %p140 = scmp.ne.s32.totalorder %s129, %s132
      %p141 = scmp.eq.s32.totalorder %s21, 11
      %p142 = por %p140, %p141
      %p143 = scmp.ne.s32.totalorder %s132, %s133
      %p144 = scmp.eq.s32.totalorder %s21, 0
      %p145 = por %p143, %p144
      %p146 = scmp.ne.s32.totalorder %s132, %s133
      %p147 = scmp.eq.s32.totalorder %s22, 11
      %p148 = por %p146, %p147
      %p150 = scmp.ne.s32.totalorder %s133, %s149
      %p151 = scmp.eq.s32.totalorder %s22, 0
      %p152 = por %p150, %p151
      %p153 = scmp.le.s32.totalorder 1, %s16
      %p154 = scmp.lt.s32.totalorder %s16, 13
      %p155 = pnand %p153, %p154
      %p156 = pneg %p155
      // Predicated region
      $region9: #{tpu_custom_call.1} parent=5 // pred_check
        _
      $region10: #{tpu_custom_call.1} parent=5 // pred_check_branch
        %158 = sbr.rel (%p155) target = $region12
      $region11: #{tpu_custom_call.1} parent=5 // pred_region
        %s159 = ssub.s32 %s16, 1
        // Predicated region
        $region13: #{tpu_custom_call.1} parent=11 // pred_check
          %p160 = pneg %p91
        $region14: #{tpu_custom_call.1} parent=11 // pred_check_branch
          %162 = sbr.rel (%p160) target = $region16
        $region15: #{tpu_custom_call.1} parent=11 // pred_region
          %s163 = smul.u32 48, %s28
          %s165 = ssub.s32 3072, 3072
          %166 = vsyncadd [#allocation7], %s165
          %s167 = sadd.s32 %s27, %s163
          %s168 = smul.addr %s167, 64
          %s169 = scalar_lea.hbm %s1, %s168
          %s170 = sshll.u32 [#allocation6], 4
          %s171 = int_to_ptr.vmem [resolvable:$true] %s170
          %176 = dma.hbm_to_vmem [thread:$0]  %s169, 3072, %s171, [#allocation7], 64, 64, 4
        $region16: #{tpu_custom_call.1} parent=11 // pred_fallthru
          _
        // Predicated region
        $region17: #{tpu_custom_call.1} parent=11 // pred_check
          %p177 = pneg %p117
        $region18: #{tpu_custom_call.1} parent=11 // pred_check_branch
          %179 = sbr.rel (%p177) target = $region20
        $region19: #{tpu_custom_call.1} parent=11 // pred_region
          %s181 = ssub.s32 16, 16
          %182 = vsyncadd [#allocation7], %s181
          %s183 = smul.addr %s27, 16
          %s184 = scalar_lea.hbm %s2, %s183
          %s186 = sshll.u32 [#allocation8], 4
          %s187 = int_to_ptr.vmem [resolvable:$true] %s186
          %189 = dma.hbm_to_vmem [thread:$0]  %s184, 16, %s187, [#allocation7]
        $region20: #{tpu_custom_call.1} parent=11 // pred_fallthru
          _
      $region12: #{tpu_custom_call.1} parent=5 // pred_fallthru
        _
      %p190 = scmp.lt.s32.totalorder %s16, 12
      // Predicated region
      $region21: #{tpu_custom_call.1} parent=5 // pred_check
        %p191 = pneg %p190
      $region22: #{tpu_custom_call.1} parent=5 // pred_check_branch
        %193 = sbr.rel (%p191) target = $region24
      $region23: #{tpu_custom_call.1} parent=5 // pred_region
        // Predicated region
        $region25: #{tpu_custom_call.1} parent=23 // pred_check
          %p194 = pneg %p57
        $region26: #{tpu_custom_call.1} parent=23 // pred_check_branch
          %196 = sbr.rel (%p194) target = $region28
        $region27: #{tpu_custom_call.1} parent=23 // pred_region
          %s197 = sand.u32 %s47, 1
          %s198 = scalar_lea.sflag [#allocation4], %s197
          %s199 = sand.u32 %s47, 1
          %s200 = smul.addr %s199, 768
          %s201 = scalar_lea.vmem [#allocation3], %s200
          %s202 = smul.u32 64, %s23
          %s203 = smul.u32 3, %s25
          %s205 = ssub.s32 12288, 12288
          %206 = vsyncadd %s198, %s205
          %s207 = smul.addr %s202, 3
          %s208 = sadd.s32 %s203, %s207
          %s209 = smul.addr %s208, 64
          %s210 = scalar_lea.hbm %s0, %s209
          %s211 = sshll.u32 %s201, 4
          %s212 = int_to_ptr.vmem [resolvable:$true] %s211
          %217 = dma.hbm_to_vmem [thread:$0]  %s210, 12288, %s212, %s198, 192, 192, 12
        $region28: #{tpu_custom_call.1} parent=23 // pred_fallthru
          _
      $region24: #{tpu_custom_call.1} parent=5 // pred_fallthru
        _
      %p218 = scmp.le.s32.totalorder 1, %s16
      %p219 = scmp.lt.s32.totalorder %s16, 13
      %p220 = pnand %p218, %p219
      %p221 = pneg %p220
      // Predicated region
      $region29: #{tpu_custom_call.1} parent=5 // pred_check
        _
      $region30: #{tpu_custom_call.1} parent=5 // pred_check_branch
        %223 = sbr.rel (%p220) target = $region32
      $region31: #{tpu_custom_call.1} parent=5 // pred_region
        %s224 = ssub.s32 %s16, 1
        %s225 = sand.u32 %s50, 1
        %s226 = scalar_lea.sflag [#allocation4], %s225
        %s227 = sand.u32 %s50, 1
        %s228 = smul.addr %s227, 768
        %s229 = scalar_lea.vmem [#allocation3], %s228
        // Predicated region
        $region33: #{tpu_custom_call.1} parent=31 // pred_check
          %p230 = pneg %p63
        $region34: #{tpu_custom_call.1} parent=31 // pred_check_branch
          %232 = sbr.rel (%p230) target = $region36
        $region35: #{tpu_custom_call.1} parent=31 // pred_region
          %233 = dma.done %s226, 12288
        $region36: #{tpu_custom_call.1} parent=31 // pred_fallthru
          _
        // Predicated region
        $region37: #{tpu_custom_call.1} parent=31 // pred_check
          %p234 = pneg %p91
        $region38: #{tpu_custom_call.1} parent=31 // pred_check_branch
          %236 = sbr.rel (%p234) target = $region40
        $region39: #{tpu_custom_call.1} parent=31 // pred_region
          %237 = dma.done [#allocation7], 3072
        $region40: #{tpu_custom_call.1} parent=31 // pred_fallthru
          _
        // Predicated region
        $region41: #{tpu_custom_call.1} parent=31 // pred_check
          %p238 = pneg %p117
        $region42: #{tpu_custom_call.1} parent=31 // pred_check_branch
          %240 = sbr.rel (%p238) target = $region44
        $region43: #{tpu_custom_call.1} parent=31 // pred_region
          %241 = dma.done [#allocation7], 16
        $region44: #{tpu_custom_call.1} parent=31 // pred_fallthru
          _
        %s242 = sand.u32 %s50, 1
        %s243 = scalar_lea.sflag [#allocation4], %s242
        %s244 = sand.u32 %s50, 1
        %s245 = smul.addr %s244, 768
        %s246 = scalar_lea.vmem [#allocation3], %s245
        %p247 = pneg %p63
        %p248 = pneg %p60
        %p249 = pneg %p91
        %p250 = pneg %p88
        %p251 = pneg %p117
        %p252 = pneg %p114
        %p253 = pneg %p145
        %p254 = pneg %p142
        %s255 = sand.u32 %s132, 1
        %s256 = scalar_lea.sflag [#allocation5], %s255
        %s257 = sand.u32 %s132, 1
        %s258 = smul.addr %s257, 512
        %s259 = scalar_lea.vmem [#allocation9], %s258
        %s260 = smul.u32 64, %s26
        %s261 = smul.u32 3, %s28
        %s262 = smul.u32 48, %s28
        %s263 = smul.u32 64, %s26
        %p265 = scmp.eq.s32.totalorder %s28, 0
        // Predicated region
        $region45: #{tpu_custom_call.1} parent=31 // pred_check
          %p266 = pneg %p265
        $region46: #{tpu_custom_call.1} parent=31 // pred_check_branch
          %268 = sbr.rel (%p266) target = $region48
        $region47: #{tpu_custom_call.1} parent=31 // pred_region
          %269 = vst [vmem:[#allocation2] sm:$0xff] 0.0
          %270 = vst [vmem:[#allocation2 + $0x8] sm:$0xff] 0.0
          %271 = vst [vmem:[#allocation2 + $0x10] sm:$0xff] 0.0
          %272 = vst [vmem:[#allocation2 + $0x18] sm:$0xff] 0.0
          %273 = vst [vmem:[#allocation2 + $0x20] sm:$0xff] 0.0
          %274 = vst [vmem:[#allocation2 + $0x28] sm:$0xff] 0.0
          %275 = vst [vmem:[#allocation2 + $0x30] sm:$0xff] 0.0
          %276 = vst [vmem:[#allocation2 + $0x38] sm:$0xff] 0.0
          %277 = vst [vmem:[#allocation2 + $0x40] sm:$0xff] 0.0
          %278 = vst [vmem:[#allocation2 + $0x48] sm:$0xff] 0.0
          %279 = vst [vmem:[#allocation2 + $0x50] sm:$0xff] 0.0
          %280 = vst [vmem:[#allocation2 + $0x58] sm:$0xff] 0.0
          %281 = vst [vmem:[#allocation2 + $0x60] sm:$0xff] 0.0
          %282 = vst [vmem:[#allocation2 + $0x68] sm:$0xff] 0.0
          %283 = vst [vmem:[#allocation2 + $0x70] sm:$0xff] 0.0
          %284 = vst [vmem:[#allocation2 + $0x78] sm:$0xff] 0.0
          %285 = vst [vmem:[#allocation2 + $0x80] sm:$0xff] 0.0
          %286 = vst [vmem:[#allocation2 + $0x88] sm:$0xff] 0.0
          %287 = vst [vmem:[#allocation2 + $0x90] sm:$0xff] 0.0
          %288 = vst [vmem:[#allocation2 + $0x98] sm:$0xff] 0.0
          %289 = vst [vmem:[#allocation2 + $0xa0] sm:$0xff] 0.0
          %290 = vst [vmem:[#allocation2 + $0xa8] sm:$0xff] 0.0
          %291 = vst [vmem:[#allocation2 + $0xb0] sm:$0xff] 0.0
          %292 = vst [vmem:[#allocation2 + $0xb8] sm:$0xff] 0.0
          %293 = vst [vmem:[#allocation2 + $0xc0] sm:$0xff] 0.0
          %294 = vst [vmem:[#allocation2 + $0xc8] sm:$0xff] 0.0
          %295 = vst [vmem:[#allocation2 + $0xd0] sm:$0xff] 0.0
          %296 = vst [vmem:[#allocation2 + $0xd8] sm:$0xff] 0.0
          %297 = vst [vmem:[#allocation2 + $0xe0] sm:$0xff] 0.0
          %298 = vst [vmem:[#allocation2 + $0xe8] sm:$0xff] 0.0
          %299 = vst [vmem:[#allocation2 + $0xf0] sm:$0xff] 0.0
          %300 = vst [vmem:[#allocation2 + $0xf8] sm:$0xff] 0.0
          %301 = vst [vmem:[#allocation2 + $0x100] sm:$0xff] 0.0
          %302 = vst [vmem:[#allocation2 + $0x108] sm:$0xff] 0.0
          %303 = vst [vmem:[#allocation2 + $0x110] sm:$0xff] 0.0
          %304 = vst [vmem:[#allocation2 + $0x118] sm:$0xff] 0.0
          %305 = vst [vmem:[#allocation2 + $0x120] sm:$0xff] 0.0
          %306 = vst [vmem:[#allocation2 + $0x128] sm:$0xff] 0.0
          %307 = vst [vmem:[#allocation2 + $0x130] sm:$0xff] 0.0
          %308 = vst [vmem:[#allocation2 + $0x138] sm:$0xff] 0.0
          %309 = vst [vmem:[#allocation2 + $0x140] sm:$0xff] 0.0
          %310 = vst [vmem:[#allocation2 + $0x148] sm:$0xff] 0.0
          %311 = vst [vmem:[#allocation2 + $0x150] sm:$0xff] 0.0
          %312 = vst [vmem:[#allocation2 + $0x158] sm:$0xff] 0.0
          %313 = vst [vmem:[#allocation2 + $0x160] sm:$0xff] 0.0
          %314 = vst [vmem:[#allocation2 + $0x168] sm:$0xff] 0.0
          %315 = vst [vmem:[#allocation2 + $0x170] sm:$0xff] 0.0
          %316 = vst [vmem:[#allocation2 + $0x178] sm:$0xff] 0.0
          %317 = vst [vmem:[#allocation2 + $0x180] sm:$0xff] 0.0
          %318 = vst [vmem:[#allocation2 + $0x188] sm:$0xff] 0.0
          %319 = vst [vmem:[#allocation2 + $0x190] sm:$0xff] 0.0
          %320 = vst [vmem:[#allocation2 + $0x198] sm:$0xff] 0.0
          %321 = vst [vmem:[#allocation2 + $0x1a0] sm:$0xff] 0.0
          %322 = vst [vmem:[#allocation2 + $0x1a8] sm:$0xff] 0.0
          %323 = vst [vmem:[#allocation2 + $0x1b0] sm:$0xff] 0.0
          %324 = vst [vmem:[#allocation2 + $0x1b8] sm:$0xff] 0.0
          %325 = vst [vmem:[#allocation2 + $0x1c0] sm:$0xff] 0.0
          %326 = vst [vmem:[#allocation2 + $0x1c8] sm:$0xff] 0.0
          %327 = vst [vmem:[#allocation2 + $0x1d0] sm:$0xff] 0.0
          %328 = vst [vmem:[#allocation2 + $0x1d8] sm:$0xff] 0.0
          %329 = vst [vmem:[#allocation2 + $0x1e0] sm:$0xff] 0.0
          %330 = vst [vmem:[#allocation2 + $0x1e8] sm:$0xff] 0.0
          %331 = vst [vmem:[#allocation2 + $0x1f0] sm:$0xff] 0.0
          %332 = vst [vmem:[#allocation2 + $0x1f8] sm:$0xff] 0.0
        $region48: #{tpu_custom_call.1} parent=31 // pred_fallthru
          _
        %v333 = vld [vmem:[#allocation2] sm:$0xff]
        %v334 = vld [vmem:[#allocation2 + $0x8] sm:$0xff]
        %v335 = vld [vmem:[#allocation2 + $0x10] sm:$0xff]
        %v336 = vld [vmem:[#allocation2 + $0x18] sm:$0xff]
        %v337 = vld [vmem:[#allocation2 + $0x20] sm:$0xff]
        %v338 = vld [vmem:[#allocation2 + $0x28] sm:$0xff]
        %v339 = vld [vmem:[#allocation2 + $0x30] sm:$0xff]
        %v340 = vld [vmem:[#allocation2 + $0x38] sm:$0xff]
        %v341 = vld [vmem:[#allocation2 + $0x40] sm:$0xff]
        %v342 = vld [vmem:[#allocation2 + $0x48] sm:$0xff]
        %v343 = vld [vmem:[#allocation2 + $0x50] sm:$0xff]
        %v344 = vld [vmem:[#allocation2 + $0x58] sm:$0xff]
        %v345 = vld [vmem:[#allocation2 + $0x60] sm:$0xff]
        %v346 = vld [vmem:[#allocation2 + $0x68] sm:$0xff]
        %v347 = vld [vmem:[#allocation2 + $0x70] sm:$0xff]
        %v348 = vld [vmem:[#allocation2 + $0x78] sm:$0xff]
        %v349 = vld [vmem:[#allocation2 + $0x80] sm:$0xff]
        %v350 = vld [vmem:[#allocation2 + $0x88] sm:$0xff]
        %v351 = vld [vmem:[#allocation2 + $0x90] sm:$0xff]
        %v352 = vld [vmem:[#allocation2 + $0x98] sm:$0xff]
        %v353 = vld [vmem:[#allocation2 + $0xa0] sm:$0xff]
        %v354 = vld [vmem:[#allocation2 + $0xa8] sm:$0xff]
        %v355 = vld [vmem:[#allocation2 + $0xb0] sm:$0xff]
        %v356 = vld [vmem:[#allocation2 + $0xb8] sm:$0xff]
        %v357 = vld [vmem:[#allocation2 + $0xc0] sm:$0xff]
        %v358 = vld [vmem:[#allocation2 + $0xc8] sm:$0xff]
        %v359 = vld [vmem:[#allocation2 + $0xd0] sm:$0xff]
        %v360 = vld [vmem:[#allocation2 + $0xd8] sm:$0xff]
        %v361 = vld [vmem:[#allocation2 + $0xe0] sm:$0xff]
        %v362 = vld [vmem:[#allocation2 + $0xe8] sm:$0xff]
        %v363 = vld [vmem:[#allocation2 + $0xf0] sm:$0xff]
        %v364 = vld [vmem:[#allocation2 + $0xf8] sm:$0xff]
        %v365 = vld [vmem:[#allocation2 + $0x100] sm:$0xff]
        %v366 = vld [vmem:[#allocation2 + $0x108] sm:$0xff]
        %v367 = vld [vmem:[#allocation2 + $0x110] sm:$0xff]
        %v368 = vld [vmem:[#allocation2 + $0x118] sm:$0xff]
        %v369 = vld [vmem:[#allocation2 + $0x120] sm:$0xff]
        %v370 = vld [vmem:[#allocation2 + $0x128] sm:$0xff]
        %v371 = vld [vmem:[#allocation2 + $0x130] sm:$0xff]
        %v372 = vld [vmem:[#allocation2 + $0x138] sm:$0xff]
        %v373 = vld [vmem:[#allocation2 + $0x140] sm:$0xff]
        %v374 = vld [vmem:[#allocation2 + $0x148] sm:$0xff]
        %v375 = vld [vmem:[#allocation2 + $0x150] sm:$0xff]
        %v376 = vld [vmem:[#allocation2 + $0x158] sm:$0xff]
        %v377 = vld [vmem:[#allocation2 + $0x160] sm:$0xff]
        %v378 = vld [vmem:[#allocation2 + $0x168] sm:$0xff]
        %v379 = vld [vmem:[#allocation2 + $0x170] sm:$0xff]
        %v380 = vld [vmem:[#allocation2 + $0x178] sm:$0xff]
        %v381 = vld [vmem:[#allocation2 + $0x180] sm:$0xff]
        %v382 = vld [vmem:[#allocation2 + $0x188] sm:$0xff]
        %v383 = vld [vmem:[#allocation2 + $0x190] sm:$0xff]
        %v384 = vld [vmem:[#allocation2 + $0x198] sm:$0xff]
        %v385 = vld [vmem:[#allocation2 + $0x1a0] sm:$0xff]
        %v386 = vld [vmem:[#allocation2 + $0x1a8] sm:$0xff]
        %v387 = vld [vmem:[#allocation2 + $0x1b0] sm:$0xff]
        %v388 = vld [vmem:[#allocation2 + $0x1b8] sm:$0xff]
        %v389 = vld [vmem:[#allocation2 + $0x1c0] sm:$0xff]
        %v390 = vld [vmem:[#allocation2 + $0x1c8] sm:$0xff]
        %v391 = vld [vmem:[#allocation2 + $0x1d0] sm:$0xff]
        %v392 = vld [vmem:[#allocation2 + $0x1d8] sm:$0xff]
        %v393 = vld [vmem:[#allocation2 + $0x1e0] sm:$0xff]
        %v394 = vld [vmem:[#allocation2 + $0x1e8] sm:$0xff]
        %v395 = vld [vmem:[#allocation2 + $0x1f0] sm:$0xff]
        %v396 = vld [vmem:[#allocation2 + $0x1f8] sm:$0xff]
        %v397 = vld [vmem:[%s229] sm:$0xff]
        %v398 = vld [vmem:[%s229 + $0x8] sm:$0xf]
        %v399 = vld [vmem:[%s229 + $0xc] sm:$0xff]
        %v400 = vld [vmem:[%s229 + $0x14] sm:$0xf]
        %v401 = vld [vmem:[%s229 + $0x18] sm:$0xff]
        %v402 = vld [vmem:[%s229 + $0x20] sm:$0xf]
        %v403 = vld [vmem:[%s229 + $0x24] sm:$0xff]
        %v404 = vld [vmem:[%s229 + $0x2c] sm:$0xf]
        %v405 = vld [vmem:[%s229 + $0x30] sm:$0xff]
        %v406 = vld [vmem:[%s229 + $0x38] sm:$0xf]
        %v407 = vld [vmem:[%s229 + $0x3c] sm:$0xff]
        %v408 = vld [vmem:[%s229 + $0x44] sm:$0xf]
        %v409 = vld [vmem:[%s229 + $0x48] sm:$0xff]
        %v410 = vld [vmem:[%s229 + $0x50] sm:$0xf]
        %v411 = vld [vmem:[%s229 + $0x54] sm:$0xff]
        %v412 = vld [vmem:[%s229 + $0x5c] sm:$0xf]
        %v413 = vld [vmem:[%s229 + $0x60] sm:$0xff]
        %v414 = vld [vmem:[%s229 + $0x68] sm:$0xf]
        %v415 = vld [vmem:[%s229 + $0x6c] sm:$0xff]
        %v416 = vld [vmem:[%s229 + $0x74] sm:$0xf]
        %v417 = vld [vmem:[%s229 + $0x78] sm:$0xff]
        %v418 = vld [vmem:[%s229 + $0x80] sm:$0xf]
        %v419 = vld [vmem:[%s229 + $0x84] sm:$0xff]
        %v420 = vld [vmem:[%s229 + $0x8c] sm:$0xf]
        %v421 = vld [vmem:[%s229 + $0x90] sm:$0xff]
        %v422 = vld [vmem:[%s229 + $0x98] sm:$0xf]
        %v423 = vld [vmem:[%s229 + $0x9c] sm:$0xff]
        %v424 = vld [vmem:[%s229 + $0xa4] sm:$0xf]
        %v425 = vld [vmem:[%s229 + $0xa8] sm:$0xff]
        %v426 = vld [vmem:[%s229 + $0xb0] sm:$0xf]
        %v427 = vld [vmem:[%s229 + $0xb4] sm:$0xff]
        %v428 = vld [vmem:[%s229 + $0xbc] sm:$0xf]
        %v429 = vld [vmem:[%s229 + $0xc0] sm:$0xff]
        %v430 = vld [vmem:[%s229 + $0xc8] sm:$0xf]
        %v431 = vld [vmem:[%s229 + $0xcc] sm:$0xff]
        %v432 = vld [vmem:[%s229 + $0xd4] sm:$0xf]
        %v433 = vld [vmem:[%s229 + $0xd8] sm:$0xff]
        %v434 = vld [vmem:[%s229 + $0xe0] sm:$0xf]
        %v435 = vld [vmem:[%s229 + $0xe4] sm:$0xff]
        %v436 = vld [vmem:[%s229 + $0xec] sm:$0xf]
        %v437 = vld [vmem:[%s229 + $0xf0] sm:$0xff]
        %v438 = vld [vmem:[%s229 + $0xf8] sm:$0xf]
        %v439 = vld [vmem:[%s229 + $0xfc] sm:$0xff]
        %v440 = vld [vmem:[%s229 + $0x104] sm:$0xf]
        %v441 = vld [vmem:[%s229 + $0x108] sm:$0xff]
        %v442 = vld [vmem:[%s229 + $0x110] sm:$0xf]
        %v443 = vld [vmem:[%s229 + $0x114] sm:$0xff]
        %v444 = vld [vmem:[%s229 + $0x11c] sm:$0xf]
        %v445 = vld [vmem:[%s229 + $0x120] sm:$0xff]
        %v446 = vld [vmem:[%s229 + $0x128] sm:$0xf]
        %v447 = vld [vmem:[%s229 + $0x12c] sm:$0xff]
        %v448 = vld [vmem:[%s229 + $0x134] sm:$0xf]
        %v449 = vld [vmem:[%s229 + $0x138] sm:$0xff]
        %v450 = vld [vmem:[%s229 + $0x140] sm:$0xf]
        %v451 = vld [vmem:[%s229 + $0x144] sm:$0xff]
        %v452 = vld [vmem:[%s229 + $0x14c] sm:$0xf]
        %v453 = vld [vmem:[%s229 + $0x150] sm:$0xff]
        %v454 = vld [vmem:[%s229 + $0x158] sm:$0xf]
        %v455 = vld [vmem:[%s229 + $0x15c] sm:$0xff]
        %v456 = vld [vmem:[%s229 + $0x164] sm:$0xf]
        %v457 = vld [vmem:[%s229 + $0x168] sm:$0xff]
        %v458 = vld [vmem:[%s229 + $0x170] sm:$0xf]
        %v459 = vld [vmem:[%s229 + $0x174] sm:$0xff]
        %v460 = vld [vmem:[%s229 + $0x17c] sm:$0xf]
        %v461 = vld [vmem:[%s229 + $0x180] sm:$0xff]
        %v462 = vld [vmem:[%s229 + $0x188] sm:$0xf]
        %v463 = vld [vmem:[%s229 + $0x18c] sm:$0xff]
        %v464 = vld [vmem:[%s229 + $0x194] sm:$0xf]
        %v465 = vld [vmem:[%s229 + $0x198] sm:$0xff]
        %v466 = vld [vmem:[%s229 + $0x1a0] sm:$0xf]
        %v467 = vld [vmem:[%s229 + $0x1a4] sm:$0xff]
        %v468 = vld [vmem:[%s229 + $0x1ac] sm:$0xf]
        %v469 = vld [vmem:[%s229 + $0x1b0] sm:$0xff]
        %v470 = vld [vmem:[%s229 + $0x1b8] sm:$0xf]
        %v471 = vld [vmem:[%s229 + $0x1bc] sm:$0xff]
        %v472 = vld [vmem:[%s229 + $0x1c4] sm:$0xf]
        %v473 = vld [vmem:[%s229 + $0x1c8] sm:$0xff]
        %v474 = vld [vmem:[%s229 + $0x1d0] sm:$0xf]
        %v475 = vld [vmem:[%s229 + $0x1d4] sm:$0xff]
        %v476 = vld [vmem:[%s229 + $0x1dc] sm:$0xf]
        %v477 = vld [vmem:[%s229 + $0x1e0] sm:$0xff]
        %v478 = vld [vmem:[%s229 + $0x1e8] sm:$0xf]
        %v479 = vld [vmem:[%s229 + $0x1ec] sm:$0xff]
        %v480 = vld [vmem:[%s229 + $0x1f4] sm:$0xf]
        %v481 = vld [vmem:[%s229 + $0x1f8] sm:$0xff]
        %v482 = vld [vmem:[%s229 + $0x200] sm:$0xf]
        %v483 = vld [vmem:[%s229 + $0x204] sm:$0xff]
        %v484 = vld [vmem:[%s229 + $0x20c] sm:$0xf]
        %v485 = vld [vmem:[%s229 + $0x210] sm:$0xff]
        %v486 = vld [vmem:[%s229 + $0x218] sm:$0xf]
        %v487 = vld [vmem:[%s229 + $0x21c] sm:$0xff]
        %v488 = vld [vmem:[%s229 + $0x224] sm:$0xf]
        %v489 = vld [vmem:[%s229 + $0x228] sm:$0xff]
        %v490 = vld [vmem:[%s229 + $0x230] sm:$0xf]
        %v491 = vld [vmem:[%s229 + $0x234] sm:$0xff]
        %v492 = vld [vmem:[%s229 + $0x23c] sm:$0xf]
        %v493 = vld [vmem:[%s229 + $0x240] sm:$0xff]
        %v494 = vld [vmem:[%s229 + $0x248] sm:$0xf]
        %v495 = vld [vmem:[%s229 + $0x24c] sm:$0xff]
        %v496 = vld [vmem:[%s229 + $0x254] sm:$0xf]
        %v497 = vld [vmem:[%s229 + $0x258] sm:$0xff]
        %v498 = vld [vmem:[%s229 + $0x260] sm:$0xf]
        %v499 = vld [vmem:[%s229 + $0x264] sm:$0xff]
        %v500 = vld [vmem:[%s229 + $0x26c] sm:$0xf]
        %v501 = vld [vmem:[%s229 + $0x270] sm:$0xff]
        %v502 = vld [vmem:[%s229 + $0x278] sm:$0xf]
        %v503 = vld [vmem:[%s229 + $0x27c] sm:$0xff]
        %v504 = vld [vmem:[%s229 + $0x284] sm:$0xf]
        %v505 = vld [vmem:[%s229 + $0x288] sm:$0xff]
        %v506 = vld [vmem:[%s229 + $0x290] sm:$0xf]
        %v507 = vld [vmem:[%s229 + $0x294] sm:$0xff]
        %v508 = vld [vmem:[%s229 + $0x29c] sm:$0xf]
        %v509 = vld [vmem:[%s229 + $0x2a0] sm:$0xff]
        %v510 = vld [vmem:[%s229 + $0x2a8] sm:$0xf]
        %v511 = vld [vmem:[%s229 + $0x2ac] sm:$0xff]
        %v512 = vld [vmem:[%s229 + $0x2b4] sm:$0xf]
        %v513 = vld [vmem:[%s229 + $0x2b8] sm:$0xff]
        %v514 = vld [vmem:[%s229 + $0x2c0] sm:$0xf]
        %v515 = vld [vmem:[%s229 + $0x2c4] sm:$0xff]
        %v516 = vld [vmem:[%s229 + $0x2cc] sm:$0xf]
        %v517 = vld [vmem:[%s229 + $0x2d0] sm:$0xff]
        %v518 = vld [vmem:[%s229 + $0x2d8] sm:$0xf]
        %v519 = vld [vmem:[%s229 + $0x2dc] sm:$0xff]
        %v520 = vld [vmem:[%s229 + $0x2e4] sm:$0xf]
        %v521 = vld [vmem:[%s229 + $0x2e8] sm:$0xff]
        %v522 = vld [vmem:[%s229 + $0x2f0] sm:$0xf]
        %v523 = vld [vmem:[%s229 + $0x2f4] sm:$0xff]
        %v524 = vld [vmem:[%s229 + $0x2fc] sm:$0xf]
        %v525 = vld [vmem:[#allocation6] sm:$0xf]
        %v526 = vld [vmem:[#allocation6 + $0x4] sm:$0xf]
        %v527 = vld [vmem:[#allocation6 + $0x8] sm:$0xf]
        %v528 = vld [vmem:[#allocation6 + $0xc] sm:$0xf]
        %v529 = vld [vmem:[#allocation6 + $0x10] sm:$0xf]
        %v530 = vld [vmem:[#allocation6 + $0x14] sm:$0xf]
        %v531 = vld [vmem:[#allocation6 + $0x18] sm:$0xf]
        %v532 = vld [vmem:[#allocation6 + $0x1c] sm:$0xf]
        %v533 = vld [vmem:[#allocation6 + $0x20] sm:$0xf]
        %v534 = vld [vmem:[#allocation6 + $0x24] sm:$0xf]
        %v535 = vld [vmem:[#allocation6 + $0x28] sm:$0xf]
        %v536 = vld [vmem:[#allocation6 + $0x2c] sm:$0xf]
        %v537 = vld [vmem:[#allocation6 + $0x30] sm:$0xf]
        %v538 = vld [vmem:[#allocation6 + $0x34] sm:$0xf]
        %v539 = vld [vmem:[#allocation6 + $0x38] sm:$0xf]
        %v540 = vld [vmem:[#allocation6 + $0x3c] sm:$0xf]
        %v541 = vld [vmem:[#allocation6 + $0x40] sm:$0xf]
        %v542 = vld [vmem:[#allocation6 + $0x44] sm:$0xf]
        %v543 = vld [vmem:[#allocation6 + $0x48] sm:$0xf]
        %v544 = vld [vmem:[#allocation6 + $0x4c] sm:$0xf]
        %v545 = vld [vmem:[#allocation6 + $0x50] sm:$0xf]
        %v546 = vld [vmem:[#allocation6 + $0x54] sm:$0xf]
        %v547 = vld [vmem:[#allocation6 + $0x58] sm:$0xf]
        %v548 = vld [vmem:[#allocation6 + $0x5c] sm:$0xf]
        %v549 = vld [vmem:[#allocation6 + $0x60] sm:$0xf]
        %v550 = vld [vmem:[#allocation6 + $0x64] sm:$0xf]
        %v551 = vld [vmem:[#allocation6 + $0x68] sm:$0xf]
        %v552 = vld [vmem:[#allocation6 + $0x6c] sm:$0xf]
        %v553 = vld [vmem:[#allocation6 + $0x70] sm:$0xf]
        %v554 = vld [vmem:[#allocation6 + $0x74] sm:$0xf]
        %v555 = vld [vmem:[#allocation6 + $0x78] sm:$0xf]
        %v556 = vld [vmem:[#allocation6 + $0x7c] sm:$0xf]
        %v557 = vld [vmem:[#allocation6 + $0x80] sm:$0xf]
        %v558 = vld [vmem:[#allocation6 + $0x84] sm:$0xf]
        %v559 = vld [vmem:[#allocation6 + $0x88] sm:$0xf]
        %v560 = vld [vmem:[#allocation6 + $0x8c] sm:$0xf]
        %v561 = vld [vmem:[#allocation6 + $0x90] sm:$0xf]
        %v562 = vld [vmem:[#allocation6 + $0x94] sm:$0xf]
        %v563 = vld [vmem:[#allocation6 + $0x98] sm:$0xf]
        %v564 = vld [vmem:[#allocation6 + $0x9c] sm:$0xf]
        %v565 = vld [vmem:[#allocation6 + $0xa0] sm:$0xf]
        %v566 = vld [vmem:[#allocation6 + $0xa4] sm:$0xf]
        %v567 = vld [vmem:[#allocation6 + $0xa8] sm:$0xf]
        %v568 = vld [vmem:[#allocation6 + $0xac] sm:$0xf]
        %v569 = vld [vmem:[#allocation6 + $0xb0] sm:$0xf]
        %v570 = vld [vmem:[#allocation6 + $0xb4] sm:$0xf]
        %v571 = vld [vmem:[#allocation6 + $0xb8] sm:$0xf]
        %v572 = vld [vmem:[#allocation6 + $0xbc] sm:$0xf]
        %v701 = vunpack.c.l.b16 %v397
        %v702 = vunpack.c.h.b16 %v397
        %v703 = vunpack.c.l.b16 %v398
        %v704 = vunpack.c.l.b16 %v399
        %v705 = vunpack.c.h.b16 %v399
        %v706 = vunpack.c.l.b16 %v400
        %v707 = vunpack.c.l.b16 %v401
        %v708 = vunpack.c.h.b16 %v401
        %v709 = vunpack.c.l.b16 %v402
        %v710 = vunpack.c.l.b16 %v403
        %v711 = vunpack.c.h.b16 %v403
        %v712 = vunpack.c.l.b16 %v404
        %v713 = vunpack.c.l.b16 %v405
        %v714 = vunpack.c.h.b16 %v405
        %v715 = vunpack.c.l.b16 %v406
        %v716 = vunpack.c.l.b16 %v407
        %v717 = vunpack.c.h.b16 %v407
        %v718 = vunpack.c.l.b16 %v408
        %v719 = vunpack.c.l.b16 %v409
        %v720 = vunpack.c.h.b16 %v409
        %v721 = vunpack.c.l.b16 %v410
        %v722 = vunpack.c.l.b16 %v411
        %v723 = vunpack.c.h.b16 %v411
        %v724 = vunpack.c.l.b16 %v412
        %v725 = vunpack.c.l.b16 %v413
        %v726 = vunpack.c.h.b16 %v413
        %v727 = vunpack.c.l.b16 %v414
        %v728 = vunpack.c.l.b16 %v415
        %v729 = vunpack.c.h.b16 %v415
        %v730 = vunpack.c.l.b16 %v416
        %v731 = vunpack.c.l.b16 %v417
        %v732 = vunpack.c.h.b16 %v417
        %v733 = vunpack.c.l.b16 %v418
        %v734 = vunpack.c.l.b16 %v419
        %v735 = vunpack.c.h.b16 %v419
        %v736 = vunpack.c.l.b16 %v420
        %v737 = vunpack.c.l.b16 %v421
        %v738 = vunpack.c.h.b16 %v421
        %v739 = vunpack.c.l.b16 %v422
        %v740 = vunpack.c.l.b16 %v423
        %v741 = vunpack.c.h.b16 %v423
        %v742 = vunpack.c.l.b16 %v424
        %v743 = vunpack.c.l.b16 %v425
        %v744 = vunpack.c.h.b16 %v425
        %v745 = vunpack.c.l.b16 %v426
        %v746 = vunpack.c.l.b16 %v427
        %v747 = vunpack.c.h.b16 %v427
        %v748 = vunpack.c.l.b16 %v428
        %v749 = vunpack.c.l.b16 %v429
        %v750 = vunpack.c.h.b16 %v429
        %v751 = vunpack.c.l.b16 %v430
        %v752 = vunpack.c.l.b16 %v431
        %v753 = vunpack.c.h.b16 %v431
        %v754 = vunpack.c.l.b16 %v432
        %v755 = vunpack.c.l.b16 %v433
        %v756 = vunpack.c.h.b16 %v433
        %v757 = vunpack.c.l.b16 %v434
        %v758 = vunpack.c.l.b16 %v435
        %v759 = vunpack.c.h.b16 %v435
        %v760 = vunpack.c.l.b16 %v436
        %v761 = vunpack.c.l.b16 %v437
        %v762 = vunpack.c.h.b16 %v437
        %v763 = vunpack.c.l.b16 %v438
        %v764 = vunpack.c.l.b16 %v439
        %v765 = vunpack.c.h.b16 %v439
        %v766 = vunpack.c.l.b16 %v440
        %v767 = vunpack.c.l.b16 %v441
        %v768 = vunpack.c.h.b16 %v441
        %v769 = vunpack.c.l.b16 %v442
        %v770 = vunpack.c.l.b16 %v443
        %v771 = vunpack.c.h.b16 %v443
        %v772 = vunpack.c.l.b16 %v444
        %v773 = vunpack.c.l.b16 %v445
        %v774 = vunpack.c.h.b16 %v445
        %v775 = vunpack.c.l.b16 %v446
        %v776 = vunpack.c.l.b16 %v447
        %v777 = vunpack.c.h.b16 %v447
        %v778 = vunpack.c.l.b16 %v448
        %v779 = vunpack.c.l.b16 %v449
        %v780 = vunpack.c.h.b16 %v449
        %v781 = vunpack.c.l.b16 %v450
        %v782 = vunpack.c.l.b16 %v451
        %v783 = vunpack.c.h.b16 %v451
        %v784 = vunpack.c.l.b16 %v452
        %v785 = vunpack.c.l.b16 %v453
        %v786 = vunpack.c.h.b16 %v453
        %v787 = vunpack.c.l.b16 %v454
        %v788 = vunpack.c.l.b16 %v455
        %v789 = vunpack.c.h.b16 %v455
        %v790 = vunpack.c.l.b16 %v456
        %v791 = vunpack.c.l.b16 %v457
        %v792 = vunpack.c.h.b16 %v457
        %v793 = vunpack.c.l.b16 %v458
        %v794 = vunpack.c.l.b16 %v459
        %v795 = vunpack.c.h.b16 %v459
        %v796 = vunpack.c.l.b16 %v460
        %v797 = vunpack.c.l.b16 %v461
        %v798 = vunpack.c.h.b16 %v461
        %v799 = vunpack.c.l.b16 %v462
        %v800 = vunpack.c.l.b16 %v463
        %v801 = vunpack.c.h.b16 %v463
        %v802 = vunpack.c.l.b16 %v464
        %v803 = vunpack.c.l.b16 %v465
        %v804 = vunpack.c.h.b16 %v465
        %v805 = vunpack.c.l.b16 %v466
        %v806 = vunpack.c.l.b16 %v467
        %v807 = vunpack.c.h.b16 %v467
        %v808 = vunpack.c.l.b16 %v468
        %v809 = vunpack.c.l.b16 %v469
        %v810 = vunpack.c.h.b16 %v469
        %v811 = vunpack.c.l.b16 %v470
        %v812 = vunpack.c.l.b16 %v471
        %v813 = vunpack.c.h.b16 %v471
        %v814 = vunpack.c.l.b16 %v472
        %v815 = vunpack.c.l.b16 %v473
        %v816 = vunpack.c.h.b16 %v473
        %v817 = vunpack.c.l.b16 %v474
        %v818 = vunpack.c.l.b16 %v475
        %v819 = vunpack.c.h.b16 %v475
        %v820 = vunpack.c.l.b16 %v476
        %v821 = vunpack.c.l.b16 %v477
        %v822 = vunpack.c.h.b16 %v477
        %v823 = vunpack.c.l.b16 %v478
        %v824 = vunpack.c.l.b16 %v479
        %v825 = vunpack.c.h.b16 %v479
        %v826 = vunpack.c.l.b16 %v480
        %v827 = vunpack.c.l.b16 %v481
        %v828 = vunpack.c.h.b16 %v481
        %v829 = vunpack.c.l.b16 %v482
        %v830 = vunpack.c.l.b16 %v483
        %v831 = vunpack.c.h.b16 %v483
        %v832 = vunpack.c.l.b16 %v484
        %v833 = vunpack.c.l.b16 %v485
        %v834 = vunpack.c.h.b16 %v485
        %v835 = vunpack.c.l.b16 %v486
        %v836 = vunpack.c.l.b16 %v487
        %v837 = vunpack.c.h.b16 %v487
        %v838 = vunpack.c.l.b16 %v488
        %v839 = vunpack.c.l.b16 %v489
        %v840 = vunpack.c.h.b16 %v489
        %v841 = vunpack.c.l.b16 %v490
        %v842 = vunpack.c.l.b16 %v491
        %v843 = vunpack.c.h.b16 %v491
        %v844 = vunpack.c.l.b16 %v492
        %v845 = vunpack.c.l.b16 %v493
        %v846 = vunpack.c.h.b16 %v493
        %v847 = vunpack.c.l.b16 %v494
        %v848 = vunpack.c.l.b16 %v495
        %v849 = vunpack.c.h.b16 %v495
        %v850 = vunpack.c.l.b16 %v496
        %v851 = vunpack.c.l.b16 %v497
        %v852 = vunpack.c.h.b16 %v497
        %v853 = vunpack.c.l.b16 %v498
        %v854 = vunpack.c.l.b16 %v499
        %v855 = vunpack.c.h.b16 %v499
        %v856 = vunpack.c.l.b16 %v500
        %v857 = vunpack.c.l.b16 %v501
        %v858 = vunpack.c.h.b16 %v501
        %v859 = vunpack.c.l.b16 %v502
        %v860 = vunpack.c.l.b16 %v503
        %v861 = vunpack.c.h.b16 %v503
        %v862 = vunpack.c.l.b16 %v504
        %v863 = vunpack.c.l.b16 %v505
        %v864 = vunpack.c.h.b16 %v505
        %v865 = vunpack.c.l.b16 %v506
        %v866 = vunpack.c.l.b16 %v507
        %v867 = vunpack.c.h.b16 %v507
        %v868 = vunpack.c.l.b16 %v508
        %v869 = vunpack.c.l.b16 %v509
        %v870 = vunpack.c.h.b16 %v509
        %v871 = vunpack.c.l.b16 %v510
        %v872 = vunpack.c.l.b16 %v511
        %v873 = vunpack.c.h.b16 %v511
        %v874 = vunpack.c.l.b16 %v512
        %v875 = vunpack.c.l.b16 %v513
        %v876 = vunpack.c.h.b16 %v513
        %v877 = vunpack.c.l.b16 %v514
        %v878 = vunpack.c.l.b16 %v515
        %v879 = vunpack.c.h.b16 %v515
        %v880 = vunpack.c.l.b16 %v516
        %v881 = vunpack.c.l.b16 %v517
        %v882 = vunpack.c.h.b16 %v517
        %v883 = vunpack.c.l.b16 %v518
        %v884 = vunpack.c.l.b16 %v519
        %v885 = vunpack.c.h.b16 %v519
        %v886 = vunpack.c.l.b16 %v520
        %v887 = vunpack.c.l.b16 %v521
        %v888 = vunpack.c.h.b16 %v521
        %v889 = vunpack.c.l.b16 %v522
        %v890 = vunpack.c.l.b16 %v523
        %v891 = vunpack.c.h.b16 %v523
        %v892 = vunpack.c.l.b16 %v524
        %v893 = vpack.c.b16 %v704, %v701
        %v894 = vpack.c.b16 %v705, %v702
        %v895 = vpack.c.b16 %v706, %v703
        %v896 = vpack.c.b16 %v710, %v707
        %v897 = vpack.c.b16 %v711, %v708
        %v898 = vpack.c.b16 %v712, %v709
        %v899 = vpack.c.b16 %v716, %v713
        %v900 = vpack.c.b16 %v717, %v714
        %v901 = vpack.c.b16 %v718, %v715
        %v902 = vpack.c.b16 %v722, %v719
        %v903 = vpack.c.b16 %v723, %v720
        %v904 = vpack.c.b16 %v724, %v721
        %v905 = vpack.c.b16 %v728, %v725
        %v906 = vpack.c.b16 %v729, %v726
        %v907 = vpack.c.b16 %v730, %v727
        %v908 = vpack.c.b16 %v734, %v731
        %v909 = vpack.c.b16 %v735, %v732
        %v910 = vpack.c.b16 %v736, %v733
        %v911 = vpack.c.b16 %v740, %v737
        %v912 = vpack.c.b16 %v741, %v738
        %v913 = vpack.c.b16 %v742, %v739
        %v914 = vpack.c.b16 %v746, %v743
        %v915 = vpack.c.b16 %v747, %v744
        %v916 = vpack.c.b16 %v748, %v745
        %v917 = vpack.c.b16 %v752, %v749
        %v918 = vpack.c.b16 %v753, %v750
        %v919 = vpack.c.b16 %v754, %v751
        %v920 = vpack.c.b16 %v758, %v755
        %v921 = vpack.c.b16 %v759, %v756
        %v922 = vpack.c.b16 %v760, %v757
        %v923 = vpack.c.b16 %v764, %v761
        %v924 = vpack.c.b16 %v765, %v762
        %v925 = vpack.c.b16 %v766, %v763
        %v926 = vpack.c.b16 %v770, %v767
        %v927 = vpack.c.b16 %v771, %v768
        %v928 = vpack.c.b16 %v772, %v769
        %v929 = vpack.c.b16 %v776, %v773
        %v930 = vpack.c.b16 %v777, %v774
        %v931 = vpack.c.b16 %v778, %v775
        %v932 = vpack.c.b16 %v782, %v779
        %v933 = vpack.c.b16 %v783, %v780
        %v934 = vpack.c.b16 %v784, %v781
        %v935 = vpack.c.b16 %v788, %v785
        %v936 = vpack.c.b16 %v789, %v786
        %v937 = vpack.c.b16 %v790, %v787
        %v938 = vpack.c.b16 %v794, %v791
        %v939 = vpack.c.b16 %v795, %v792
        %v940 = vpack.c.b16 %v796, %v793
        %v941 = vpack.c.b16 %v800, %v797
        %v942 = vpack.c.b16 %v801, %v798
        %v943 = vpack.c.b16 %v802, %v799
        %v944 = vpack.c.b16 %v806, %v803
        %v945 = vpack.c.b16 %v807, %v804
        %v946 = vpack.c.b16 %v808, %v805
        %v947 = vpack.c.b16 %v812, %v809
        %v948 = vpack.c.b16 %v813, %v810
        %v949 = vpack.c.b16 %v814, %v811
        %v950 = vpack.c.b16 %v818, %v815
        %v951 = vpack.c.b16 %v819, %v816
        %v952 = vpack.c.b16 %v820, %v817
        %v953 = vpack.c.b16 %v824, %v821
        %v954 = vpack.c.b16 %v825, %v822
        %v955 = vpack.c.b16 %v826, %v823
        %v956 = vpack.c.b16 %v830, %v827
        %v957 = vpack.c.b16 %v831, %v828
        %v958 = vpack.c.b16 %v832, %v829
        %v959 = vpack.c.b16 %v836, %v833
        %v960 = vpack.c.b16 %v837, %v834
        %v961 = vpack.c.b16 %v838, %v835
        %v962 = vpack.c.b16 %v842, %v839
        %v963 = vpack.c.b16 %v843, %v840
        %v964 = vpack.c.b16 %v844, %v841
        %v965 = vpack.c.b16 %v848, %v845
        %v966 = vpack.c.b16 %v849, %v846
        %v967 = vpack.c.b16 %v850, %v847
        %v968 = vpack.c.b16 %v854, %v851
        %v969 = vpack.c.b16 %v855, %v852
        %v970 = vpack.c.b16 %v856, %v853
        %v971 = vpack.c.b16 %v860, %v857
        %v972 = vpack.c.b16 %v861, %v858
        %v973 = vpack.c.b16 %v862, %v859
        %v974 = vpack.c.b16 %v866, %v863
        %v975 = vpack.c.b16 %v867, %v864
        %v976 = vpack.c.b16 %v868, %v865
        %v977 = vpack.c.b16 %v872, %v869
        %v978 = vpack.c.b16 %v873, %v870
        %v979 = vpack.c.b16 %v874, %v871
        %v980 = vpack.c.b16 %v878, %v875
        %v981 = vpack.c.b16 %v879, %v876
        %v982 = vpack.c.b16 %v880, %v877
        %v983 = vpack.c.b16 %v884, %v881
        %v984 = vpack.c.b16 %v885, %v882
        %v985 = vpack.c.b16 %v886, %v883
        %v986 = vpack.c.b16 %v890, %v887
        %v987 = vpack.c.b16 %v891, %v888
        %v988 = vpack.c.b16 %v892, %v889
        %v1133 = vunpack.c.l.b16 %v525
        %v1134 = vunpack.c.l.b16 %v526
        %v1135 = vunpack.c.l.b16 %v527
        %v1136 = vunpack.c.l.b16 %v528
        %v1137 = vunpack.c.l.b16 %v529
        %v1138 = vunpack.c.l.b16 %v530
        %v1139 = vunpack.c.l.b16 %v531
        %v1140 = vunpack.c.l.b16 %v532
        %v1141 = vunpack.c.l.b16 %v533
        %v1142 = vunpack.c.l.b16 %v534
        %v1143 = vunpack.c.l.b16 %v535
        %v1144 = vunpack.c.l.b16 %v536
        %v1145 = vunpack.c.l.b16 %v537
        %v1146 = vunpack.c.l.b16 %v538
        %v1147 = vunpack.c.l.b16 %v539
        %v1148 = vunpack.c.l.b16 %v540
        %v1149 = vunpack.c.l.b16 %v541
        %v1150 = vunpack.c.l.b16 %v542
        %v1151 = vunpack.c.l.b16 %v543
        %v1152 = vunpack.c.l.b16 %v544
        %v1153 = vunpack.c.l.b16 %v545
        %v1154 = vunpack.c.l.b16 %v546
        %v1155 = vunpack.c.l.b16 %v547
        %v1156 = vunpack.c.l.b16 %v548
        %v1157 = vunpack.c.l.b16 %v549
        %v1158 = vunpack.c.l.b16 %v550
        %v1159 = vunpack.c.l.b16 %v551
        %v1160 = vunpack.c.l.b16 %v552
        %v1161 = vunpack.c.l.b16 %v553
        %v1162 = vunpack.c.l.b16 %v554
        %v1163 = vunpack.c.l.b16 %v555
        %v1164 = vunpack.c.l.b16 %v556
        %v1165 = vunpack.c.l.b16 %v557
        %v1166 = vunpack.c.l.b16 %v558
        %v1167 = vunpack.c.l.b16 %v559
        %v1168 = vunpack.c.l.b16 %v560
        %v1169 = vunpack.c.l.b16 %v561
        %v1170 = vunpack.c.l.b16 %v562
        %v1171 = vunpack.c.l.b16 %v563
        %v1172 = vunpack.c.l.b16 %v564
        %v1173 = vunpack.c.l.b16 %v565
        %v1174 = vunpack.c.l.b16 %v566
        %v1175 = vunpack.c.l.b16 %v567
        %v1176 = vunpack.c.l.b16 %v568
        %v1177 = vunpack.c.l.b16 %v569
        %v1178 = vunpack.c.l.b16 %v570
        %v1179 = vunpack.c.l.b16 %v571
        %v1180 = vunpack.c.l.b16 %v572
        %v1181 = vpack.c.b16 %v1134, %v1133
        %v1182 = vpack.c.b16 %v1136, %v1135
        %v1183 = vpack.c.b16 %v1138, %v1137
        %v1184 = vpack.c.b16 %v1140, %v1139
        %v1185 = vpack.c.b16 %v1142, %v1141
        %v1186 = vpack.c.b16 %v1144, %v1143
        %v1187 = vpack.c.b16 %v1146, %v1145
        %v1188 = vpack.c.b16 %v1148, %v1147
        %v1189 = vpack.c.b16 %v1150, %v1149
        %v1190 = vpack.c.b16 %v1152, %v1151
        %v1191 = vpack.c.b16 %v1154, %v1153
        %v1192 = vpack.c.b16 %v1156, %v1155
        %v1193 = vpack.c.b16 %v1158, %v1157
        %v1194 = vpack.c.b16 %v1160, %v1159
        %v1195 = vpack.c.b16 %v1162, %v1161
        %v1196 = vpack.c.b16 %v1164, %v1163
        %v1197 = vpack.c.b16 %v1166, %v1165
        %v1198 = vpack.c.b16 %v1168, %v1167
        %v1199 = vpack.c.b16 %v1170, %v1169
        %v1200 = vpack.c.b16 %v1172, %v1171
        %v1201 = vpack.c.b16 %v1174, %v1173
        %v1202 = vpack.c.b16 %v1176, %v1175
        %v1203 = vpack.c.b16 %v1178, %v1177
        %v1204 = vpack.c.b16 %v1180, %v1179
        %1229 = vmatprep.subr.bf16.mxu0 0
        %1230 = vmatpush1.bf16.msra.mxu0 %v1188
        %1231 = vmatprep.subr.bf16.mxu0 0
        %1232 = vmatpush1.bf16.msra.mxu0 %v1187
        %1233 = vmatprep.subr.bf16.mxu0 0
        %1234 = vmatpush1.bf16.msra.mxu0 %v1186
        %1235 = vmatprep.subr.bf16.mxu0 0
        %1236 = vmatpush1.bf16.msra.mxu0 %v1185
        %1237 = vmatprep.subr.bf16.mxu0 0
        %1238 = vmatpush1.bf16.msra.mxu0 %v1184
        %1239 = vmatprep.subr.bf16.mxu0 0
        %1240 = vmatpush1.bf16.msra.mxu0 %v1183
        %1241 = vmatprep.subr.bf16.mxu0 0
        %1242 = vmatpush1.bf16.msra.mxu0 %v1182
        %1243 = vmatprep.subr.bf16.mxu0 0
        %1244 = vmatpush1.bf16.msra.mxu0 %v1181
        %1245 = vmatprep.subr.bf16.mxu0 0
        %1246 = vmatpush2.bf16.msra.mxu0 %v1196
        %1247 = vmatprep.subr.bf16.mxu0 0
        %1248 = vmatpush2.bf16.msra.mxu0 %v1195
        %1249 = vmatprep.subr.bf16.mxu0 0
        %1250 = vmatpush2.bf16.msra.mxu0 %v1194
        %1251 = vmatprep.subr.bf16.mxu0 0
        %1252 = vmatpush2.bf16.msra.mxu0 %v1193
        %1253 = vmatprep.subr.bf16.mxu0 0
        %1254 = vmatpush2.bf16.msra.mxu0 %v1192
        %1255 = vmatprep.subr.bf16.mxu0 0
        %1256 = vmatpush2.bf16.msra.mxu0 %v1191
        %1257 = vmatprep.subr.bf16.mxu0 0
        %1258 = vmatpush2.bf16.msra.mxu0 %v1190
        %1259 = vmatprep.subr.bf16.mxu0 0
        %1260 = vmatpush2.bf16.msra.mxu0 %v1189
        %1261 = vmatprep.mubr.bf16.mxu0 %v894
        %1262 = vmatmul.mubr.bf16.gmra.mxu0 %v893
        %v1263 = vpop.f32.mrf.mxu0
        %v1264 = vadd.f32 0.0, %v1263
        %v1265 = vpop.f32.mrf.mxu0
        %v1266 = vpop.f32.mrf.mxu0
        %v1267 = vadd.f32 0.0, %v1266
        %v1268 = vpop.f32.mrf.mxu0
        %1269 = vmatprep.mubr.bf16.mxu0 %v897
        %1270 = vmatmul.mubr.bf16.gmra.mxu0 %v896
        %v1271 = vpop.f32.mrf.mxu0
        %v1272 = vadd.f32 0.0, %v1271
        %v1273 = vpop.f32.mrf.mxu0
        %v1274 = vpop.f32.mrf.mxu0
        %v1275 = vadd.f32 0.0, %v1274
        %v1276 = vpop.f32.mrf.mxu0
        %1277 = vmatprep.mubr.bf16.mxu0 %v900
        %1278 = vmatmul.mubr.bf16.gmra.mxu0 %v899
        %v1279 = vpop.f32.mrf.mxu0
        %v1280 = vadd.f32 0.0, %v1279
        %v1281 = vpop.f32.mrf.mxu0
        %v1282 = vpop.f32.mrf.mxu0
        %v1283 = vadd.f32 0.0, %v1282
        %v1284 = vpop.f32.mrf.mxu0
        %1285 = vmatprep.mubr.bf16.mxu0 %v903
        %1286 = vmatmul.mubr.bf16.gmra.mxu0 %v902
        %v1287 = vpop.f32.mrf.mxu0
        %v1288 = vadd.f32 0.0, %v1287
        %v1289 = vpop.f32.mrf.mxu0
        %v1290 = vpop.f32.mrf.mxu0
        %v1291 = vadd.f32 0.0, %v1290
        %v1292 = vpop.f32.mrf.mxu0
        %1293 = vmatprep.mubr.bf16.mxu0 %v906
        %1294 = vmatmul.mubr.bf16.gmra.mxu0 %v905
        %v1295 = vpop.f32.mrf.mxu0
        %v1296 = vadd.f32 0.0, %v1295
        %v1297 = vpop.f32.mrf.mxu0
        %v1298 = vpop.f32.mrf.mxu0
        %v1299 = vadd.f32 0.0, %v1298
        %v1300 = vpop.f32.mrf.mxu0
        %1301 = vmatprep.mubr.bf16.mxu0 %v909
        %1302 = vmatmul.mubr.bf16.gmra.mxu0 %v908
        %v1303 = vpop.f32.mrf.mxu0
        %v1304 = vadd.f32 0.0, %v1303
        %v1305 = vpop.f32.mrf.mxu0
        %v1306 = vpop.f32.mrf.mxu0
        %v1307 = vadd.f32 0.0, %v1306
        %v1308 = vpop.f32.mrf.mxu0
        %1309 = vmatprep.mubr.bf16.mxu0 %v912
        %1310 = vmatmul.mubr.bf16.gmra.mxu0 %v911
        %v1311 = vpop.f32.mrf.mxu0
        %v1312 = vadd.f32 0.0, %v1311
        %v1313 = vpop.f32.mrf.mxu0
        %v1314 = vpop.f32.mrf.mxu0
        %v1315 = vadd.f32 0.0, %v1314
        %v1316 = vpop.f32.mrf.mxu0
        %1317 = vmatprep.mubr.bf16.mxu0 %v915
        %1318 = vmatmul.mubr.bf16.gmra.mxu0 %v914
        %v1319 = vpop.f32.mrf.mxu0
        %v1320 = vadd.f32 0.0, %v1319
        %v1321 = vpop.f32.mrf.mxu0
        %v1322 = vpop.f32.mrf.mxu0
        %v1323 = vadd.f32 0.0, %v1322
        %v1324 = vpop.f32.mrf.mxu0
        %1325 = vmatprep.mubr.bf16.mxu0 %v918
        %1326 = vmatmul.mubr.bf16.gmra.mxu0 %v917
        %v1327 = vpop.f32.mrf.mxu0
        %v1328 = vadd.f32 0.0, %v1327
        %v1329 = vpop.f32.mrf.mxu0
        %v1330 = vpop.f32.mrf.mxu0
        %v1331 = vadd.f32 0.0, %v1330
        %v1332 = vpop.f32.mrf.mxu0
        %1333 = vmatprep.mubr.bf16.mxu0 %v921
        %1334 = vmatmul.mubr.bf16.gmra.mxu0 %v920
        %v1335 = vpop.f32.mrf.mxu0
        %v1336 = vadd.f32 0.0, %v1335
        %v1337 = vpop.f32.mrf.mxu0
        %v1338 = vpop.f32.mrf.mxu0
        %v1339 = vadd.f32 0.0, %v1338
        %v1340 = vpop.f32.mrf.mxu0
        %1341 = vmatprep.mubr.bf16.mxu0 %v924
        %1342 = vmatmul.mubr.bf16.gmra.mxu0 %v923
        %v1343 = vpop.f32.mrf.mxu0
        %v1344 = vadd.f32 0.0, %v1343
        %v1345 = vpop.f32.mrf.mxu0
        %v1346 = vpop.f32.mrf.mxu0
        %v1347 = vadd.f32 0.0, %v1346
        %v1348 = vpop.f32.mrf.mxu0
        %1349 = vmatprep.mubr.bf16.mxu0 %v927
        %1350 = vmatmul.mubr.bf16.gmra.mxu0 %v926
        %v1351 = vpop.f32.mrf.mxu0
        %v1352 = vadd.f32 0.0, %v1351
        %v1353 = vpop.f32.mrf.mxu0
        %v1354 = vpop.f32.mrf.mxu0
        %v1355 = vadd.f32 0.0, %v1354
        %v1356 = vpop.f32.mrf.mxu0
        %1357 = vmatprep.mubr.bf16.mxu0 %v930
        %1358 = vmatmul.mubr.bf16.gmra.mxu0 %v929
        %v1359 = vpop.f32.mrf.mxu0
        %v1360 = vadd.f32 0.0, %v1359
        %v1361 = vpop.f32.mrf.mxu0
        %v1362 = vpop.f32.mrf.mxu0
        %v1363 = vadd.f32 0.0, %v1362
        %v1364 = vpop.f32.mrf.mxu0
        %1365 = vmatprep.mubr.bf16.mxu0 %v933
        %1366 = vmatmul.mubr.bf16.gmra.mxu0 %v932
        %v1367 = vpop.f32.mrf.mxu0
        %v1368 = vadd.f32 0.0, %v1367
        %v1369 = vpop.f32.mrf.mxu0
        %v1370 = vpop.f32.mrf.mxu0
        %v1371 = vadd.f32 0.0, %v1370
        %v1372 = vpop.f32.mrf.mxu0
        %1373 = vmatprep.mubr.bf16.mxu0 %v936
        %1374 = vmatmul.mubr.bf16.gmra.mxu0 %v935
        %v1375 = vpop.f32.mrf.mxu0
        %v1376 = vadd.f32 0.0, %v1375
        %v1377 = vpop.f32.mrf.mxu0
        %v1378 = vpop.f32.mrf.mxu0
        %v1379 = vadd.f32 0.0, %v1378
        %v1380 = vpop.f32.mrf.mxu0
        %1381 = vmatprep.mubr.bf16.mxu0 %v939
        %1382 = vmatmul.mubr.bf16.gmra.mxu0 %v938
        %v1383 = vpop.f32.mrf.mxu0
        %v1384 = vadd.f32 0.0, %v1383
        %v1385 = vpop.f32.mrf.mxu0
        %v1386 = vpop.f32.mrf.mxu0
        %v1387 = vadd.f32 0.0, %v1386
        %v1388 = vpop.f32.mrf.mxu0
        %1389 = vmatprep.mubr.bf16.mxu0 %v942
        %1390 = vmatmul.mubr.bf16.gmra.mxu0 %v941
        %v1391 = vpop.f32.mrf.mxu0
        %v1392 = vadd.f32 0.0, %v1391
        %v1393 = vpop.f32.mrf.mxu0
        %v1394 = vpop.f32.mrf.mxu0
        %v1395 = vadd.f32 0.0, %v1394
        %v1396 = vpop.f32.mrf.mxu0
        %1397 = vmatprep.mubr.bf16.mxu0 %v945
        %1398 = vmatmul.mubr.bf16.gmra.mxu0 %v944
        %v1399 = vpop.f32.mrf.mxu0
        %v1400 = vadd.f32 0.0, %v1399
        %v1401 = vpop.f32.mrf.mxu0
        %v1402 = vpop.f32.mrf.mxu0
        %v1403 = vadd.f32 0.0, %v1402
        %v1404 = vpop.f32.mrf.mxu0
        %1405 = vmatprep.mubr.bf16.mxu0 %v948
        %1406 = vmatmul.mubr.bf16.gmra.mxu0 %v947
        %v1407 = vpop.f32.mrf.mxu0
        %v1408 = vadd.f32 0.0, %v1407
        %v1409 = vpop.f32.mrf.mxu0
        %v1410 = vpop.f32.mrf.mxu0
        %v1411 = vadd.f32 0.0, %v1410
        %v1412 = vpop.f32.mrf.mxu0
        %1413 = vmatprep.mubr.bf16.mxu0 %v951
        %1414 = vmatmul.mubr.bf16.gmra.mxu0 %v950
        %v1415 = vpop.f32.mrf.mxu0
        %v1416 = vadd.f32 0.0, %v1415
        %v1417 = vpop.f32.mrf.mxu0
        %v1418 = vpop.f32.mrf.mxu0
        %v1419 = vadd.f32 0.0, %v1418
        %v1420 = vpop.f32.mrf.mxu0
        %1421 = vmatprep.mubr.bf16.mxu0 %v954
        %1422 = vmatmul.mubr.bf16.gmra.mxu0 %v953
        %v1423 = vpop.f32.mrf.mxu0
        %v1424 = vadd.f32 0.0, %v1423
        %v1425 = vpop.f32.mrf.mxu0
        %v1426 = vpop.f32.mrf.mxu0
        %v1427 = vadd.f32 0.0, %v1426
        %v1428 = vpop.f32.mrf.mxu0
        %1429 = vmatprep.mubr.bf16.mxu0 %v957
        %1430 = vmatmul.mubr.bf16.gmra.mxu0 %v956
        %v1431 = vpop.f32.mrf.mxu0
        %v1432 = vadd.f32 0.0, %v1431
        %v1433 = vpop.f32.mrf.mxu0
        %v1434 = vpop.f32.mrf.mxu0
        %v1435 = vadd.f32 0.0, %v1434
        %v1436 = vpop.f32.mrf.mxu0
        %1437 = vmatprep.mubr.bf16.mxu0 %v960
        %1438 = vmatmul.mubr.bf16.gmra.mxu0 %v959
        %v1439 = vpop.f32.mrf.mxu0
        %v1440 = vadd.f32 0.0, %v1439
        %v1441 = vpop.f32.mrf.mxu0
        %v1442 = vpop.f32.mrf.mxu0
        %v1443 = vadd.f32 0.0, %v1442
        %v1444 = vpop.f32.mrf.mxu0
        %1445 = vmatprep.mubr.bf16.mxu0 %v963
        %1446 = vmatmul.mubr.bf16.gmra.mxu0 %v962
        %v1447 = vpop.f32.mrf.mxu0
        %v1448 = vadd.f32 0.0, %v1447
        %v1449 = vpop.f32.mrf.mxu0
        %v1450 = vpop.f32.mrf.mxu0
        %v1451 = vadd.f32 0.0, %v1450
        %v1452 = vpop.f32.mrf.mxu0
        %1453 = vmatprep.mubr.bf16.mxu0 %v966
        %1454 = vmatmul.mubr.bf16.gmra.mxu0 %v965
        %v1455 = vpop.f32.mrf.mxu0
        %v1456 = vadd.f32 0.0, %v1455
        %v1457 = vpop.f32.mrf.mxu0
        %v1458 = vpop.f32.mrf.mxu0
        %v1459 = vadd.f32 0.0, %v1458
        %v1460 = vpop.f32.mrf.mxu0
        %1461 = vmatprep.mubr.bf16.mxu0 %v969
        %1462 = vmatmul.mubr.bf16.gmra.mxu0 %v968
        %v1463 = vpop.f32.mrf.mxu0
        %v1464 = vadd.f32 0.0, %v1463
        %v1465 = vpop.f32.mrf.mxu0
        %v1466 = vpop.f32.mrf.mxu0
        %v1467 = vadd.f32 0.0, %v1466
        %v1468 = vpop.f32.mrf.mxu0
        %1469 = vmatprep.mubr.bf16.mxu0 %v972
        %1470 = vmatmul.mubr.bf16.gmra.mxu0 %v971
        %v1471 = vpop.f32.mrf.mxu0
        %v1472 = vadd.f32 0.0, %v1471
        %v1473 = vpop.f32.mrf.mxu0
        %v1474 = vpop.f32.mrf.mxu0
        %v1475 = vadd.f32 0.0, %v1474
        %v1476 = vpop.f32.mrf.mxu0
        %1477 = vmatprep.mubr.bf16.mxu0 %v975
        %1478 = vmatmul.mubr.bf16.gmra.mxu0 %v974
        %v1479 = vpop.f32.mrf.mxu0
        %v1480 = vadd.f32 0.0, %v1479
        %v1481 = vpop.f32.mrf.mxu0
        %v1482 = vpop.f32.mrf.mxu0
        %v1483 = vadd.f32 0.0, %v1482
        %v1484 = vpop.f32.mrf.mxu0
        %1485 = vmatprep.mubr.bf16.mxu0 %v978
        %1486 = vmatmul.mubr.bf16.gmra.mxu0 %v977
        %v1487 = vpop.f32.mrf.mxu0
        %v1488 = vadd.f32 0.0, %v1487
        %v1489 = vpop.f32.mrf.mxu0
        %v1490 = vpop.f32.mrf.mxu0
        %v1491 = vadd.f32 0.0, %v1490
        %v1492 = vpop.f32.mrf.mxu0
        %1493 = vmatprep.mubr.bf16.mxu0 %v981
        %1494 = vmatmul.mubr.bf16.gmra.mxu0 %v980
        %v1495 = vpop.f32.mrf.mxu0
        %v1496 = vadd.f32 0.0, %v1495
        %v1497 = vpop.f32.mrf.mxu0
        %v1498 = vpop.f32.mrf.mxu0
        %v1499 = vadd.f32 0.0, %v1498
        %v1500 = vpop.f32.mrf.mxu0
        %1501 = vmatprep.mubr.bf16.mxu0 %v984
        %1502 = vmatmul.mubr.bf16.gmra.mxu0 %v983
        %v1503 = vpop.f32.mrf.mxu0
        %v1504 = vadd.f32 0.0, %v1503
        %v1505 = vpop.f32.mrf.mxu0
        %v1506 = vpop.f32.mrf.mxu0
        %v1507 = vadd.f32 0.0, %v1506
        %v1508 = vpop.f32.mrf.mxu0
        %1509 = vmatprep.mubr.bf16.mxu0 %v987
        %1510 = vmatmul.mubr.bf16.gmra.mxu0 %v986
        %v1511 = vpop.f32.mrf.mxu0
        %v1512 = vadd.f32 0.0, %v1511
        %v1513 = vpop.f32.mrf.mxu0
        %v1514 = vpop.f32.mrf.mxu0
        %v1515 = vadd.f32 0.0, %v1514
        %v1516 = vpop.f32.mrf.mxu0
        %1517 = vdwg.mxu0
        %1518 = vmatprep.subr.bf16.mxu0 0
        %1519 = vmatpush1.bf16.msra.mxu0 %v1204
        %1520 = vmatprep.subr.bf16.mxu0 0
        %1521 = vmatpush1.bf16.msra.mxu0 %v1203
        %1522 = vmatprep.subr.bf16.mxu0 0
        %1523 = vmatpush1.bf16.msra.mxu0 %v1202
        %1524 = vmatprep.subr.bf16.mxu0 0
        %1525 = vmatpush1.bf16.msra.mxu0 %v1201
        %1526 = vmatprep.subr.bf16.mxu0 0
        %1527 = vmatpush1.bf16.msra.mxu0 %v1200
        %1528 = vmatprep.subr.bf16.mxu0 0
        %1529 = vmatpush1.bf16.msra.mxu0 %v1199
        %1530 = vmatprep.subr.bf16.mxu0 0
        %1531 = vmatpush1.bf16.msra.mxu0 %v1198
        %1532 = vmatprep.subr.bf16.mxu0 0
        %1533 = vmatpush1.bf16.msra.mxu0 %v1197
        %1534 = vmatprep.subr.bf16.mxu0 0
        %1535 = vmatpush2.bf16.msra.mxu0 0
        %1536 = vmatprep.subr.bf16.mxu0 0
        %1537 = vmatpush2.bf16.msra.mxu0 0
        %1538 = vmatprep.subr.bf16.mxu0 0
        %1539 = vmatpush2.bf16.msra.mxu0 0
        %1540 = vmatprep.subr.bf16.mxu0 0
        %1541 = vmatpush2.bf16.msra.mxu0 0
        %1542 = vmatprep.subr.bf16.mxu0 0
        %1543 = vmatpush2.bf16.msra.mxu0 0
        %1544 = vmatprep.subr.bf16.mxu0 0
        %1545 = vmatpush2.bf16.msra.mxu0 0
        %1546 = vmatprep.subr.bf16.mxu0 0
        %1547 = vmatpush2.bf16.msra.mxu0 0
        %1548 = vmatprep.subr.bf16.mxu0 0
        %1549 = vmatpush2.bf16.msra.mxu0 0
        %1550 = vmatprep.mubr.bf16.mxu0 0
        %1551 = vmatmul.mubr.bf16.gmra.mxu0 %v895
        %v1552 = vpop.f32.mrf.mxu0
        %v1553 = vadd.f32 %v1264, %v1552
        %v1554 = vpop.f32.mrf.mxu0
        %v1555 = vpop.f32.mrf.mxu0
        %v1556 = vadd.f32 %v1267, %v1555
        %v1557 = vpop.f32.mrf.mxu0
        %1558 = vmatprep.mubr.bf16.mxu0 0
        %1559 = vmatmul.mubr.bf16.gmra.mxu0 %v898
        %v1560 = vpop.f32.mrf.mxu0
        %v1561 = vadd.f32 %v1272, %v1560
        %v1562 = vpop.f32.mrf.mxu0
        %v1563 = vpop.f32.mrf.mxu0
        %v1564 = vadd.f32 %v1275, %v1563
        %v1565 = vpop.f32.mrf.mxu0
        %1566 = vmatprep.mubr.bf16.mxu0 0
        %1567 = vmatmul.mubr.bf16.gmra.mxu0 %v901
        %v1568 = vpop.f32.mrf.mxu0
        %v1569 = vadd.f32 %v1280, %v1568
        %v1570 = vpop.f32.mrf.mxu0
        %v1571 = vpop.f32.mrf.mxu0
        %v1572 = vadd.f32 %v1283, %v1571
        %v1573 = vpop.f32.mrf.mxu0
        %1574 = vmatprep.mubr.bf16.mxu0 0
        %1575 = vmatmul.mubr.bf16.gmra.mxu0 %v904
        %v1576 = vpop.f32.mrf.mxu0
        %v1577 = vadd.f32 %v1288, %v1576
        %v1578 = vpop.f32.mrf.mxu0
        %v1579 = vpop.f32.mrf.mxu0
        %v1580 = vadd.f32 %v1291, %v1579
        %v1581 = vpop.f32.mrf.mxu0
        %1582 = vmatprep.mubr.bf16.mxu0 0
        %1583 = vmatmul.mubr.bf16.gmra.mxu0 %v907
        %v1584 = vpop.f32.mrf.mxu0
        %v1585 = vadd.f32 %v1296, %v1584
        %v1586 = vpop.f32.mrf.mxu0
        %v1587 = vpop.f32.mrf.mxu0
        %v1588 = vadd.f32 %v1299, %v1587
        %v1589 = vpop.f32.mrf.mxu0
        %1590 = vmatprep.mubr.bf16.mxu0 0
        %1591 = vmatmul.mubr.bf16.gmra.mxu0 %v910
        %v1592 = vpop.f32.mrf.mxu0
        %v1593 = vadd.f32 %v1304, %v1592
        %v1594 = vpop.f32.mrf.mxu0
        %v1595 = vpop.f32.mrf.mxu0
        %v1596 = vadd.f32 %v1307, %v1595
        %v1597 = vpop.f32.mrf.mxu0
        %1598 = vmatprep.mubr.bf16.mxu0 0
        %1599 = vmatmul.mubr.bf16.gmra.mxu0 %v913
        %v1600 = vpop.f32.mrf.mxu0
        %v1601 = vadd.f32 %v1312, %v1600
        %v1602 = vpop.f32.mrf.mxu0
        %v1603 = vpop.f32.mrf.mxu0
        %v1604 = vadd.f32 %v1315, %v1603
        %v1605 = vpop.f32.mrf.mxu0
        %1606 = vmatprep.mubr.bf16.mxu0 0
        %1607 = vmatmul.mubr.bf16.gmra.mxu0 %v916
        %v1608 = vpop.f32.mrf.mxu0
        %v1609 = vadd.f32 %v1320, %v1608
        %v1610 = vpop.f32.mrf.mxu0
        %v1611 = vpop.f32.mrf.mxu0
        %v1612 = vadd.f32 %v1323, %v1611
        %v1613 = vpop.f32.mrf.mxu0
        %1614 = vmatprep.mubr.bf16.mxu0 0
        %1615 = vmatmul.mubr.bf16.gmra.mxu0 %v919
        %v1616 = vpop.f32.mrf.mxu0
        %v1617 = vadd.f32 %v1328, %v1616
        %v1618 = vpop.f32.mrf.mxu0
        %v1619 = vpop.f32.mrf.mxu0
        %v1620 = vadd.f32 %v1331, %v1619
        %v1621 = vpop.f32.mrf.mxu0
        %1622 = vmatprep.mubr.bf16.mxu0 0
        %1623 = vmatmul.mubr.bf16.gmra.mxu0 %v922
        %v1624 = vpop.f32.mrf.mxu0
        %v1625 = vadd.f32 %v1336, %v1624
        %v1626 = vpop.f32.mrf.mxu0
        %v1627 = vpop.f32.mrf.mxu0
        %v1628 = vadd.f32 %v1339, %v1627
        %v1629 = vpop.f32.mrf.mxu0
        %1630 = vmatprep.mubr.bf16.mxu0 0
        %1631 = vmatmul.mubr.bf16.gmra.mxu0 %v925
        %v1632 = vpop.f32.mrf.mxu0
        %v1633 = vadd.f32 %v1344, %v1632
        %v1634 = vpop.f32.mrf.mxu0
        %v1635 = vpop.f32.mrf.mxu0
        %v1636 = vadd.f32 %v1347, %v1635
        %v1637 = vpop.f32.mrf.mxu0
        %1638 = vmatprep.mubr.bf16.mxu0 0
        %1639 = vmatmul.mubr.bf16.gmra.mxu0 %v928
        %v1640 = vpop.f32.mrf.mxu0
        %v1641 = vadd.f32 %v1352, %v1640
        %v1642 = vpop.f32.mrf.mxu0
        %v1643 = vpop.f32.mrf.mxu0
        %v1644 = vadd.f32 %v1355, %v1643
        %v1645 = vpop.f32.mrf.mxu0
        %1646 = vmatprep.mubr.bf16.mxu0 0
        %1647 = vmatmul.mubr.bf16.gmra.mxu0 %v931
        %v1648 = vpop.f32.mrf.mxu0
        %v1649 = vadd.f32 %v1360, %v1648
        %v1650 = vpop.f32.mrf.mxu0
        %v1651 = vpop.f32.mrf.mxu0
        %v1652 = vadd.f32 %v1363, %v1651
        %v1653 = vpop.f32.mrf.mxu0
        %1654 = vmatprep.mubr.bf16.mxu0 0
        %1655 = vmatmul.mubr.bf16.gmra.mxu0 %v934
        %v1656 = vpop.f32.mrf.mxu0
        %v1657 = vadd.f32 %v1368, %v1656
        %v1658 = vpop.f32.mrf.mxu0
        %v1659 = vpop.f32.mrf.mxu0
        %v1660 = vadd.f32 %v1371, %v1659
        %v1661 = vpop.f32.mrf.mxu0
        %1662 = vmatprep.mubr.bf16.mxu0 0
        %1663 = vmatmul.mubr.bf16.gmra.mxu0 %v937
        %v1664 = vpop.f32.mrf.mxu0
        %v1665 = vadd.f32 %v1376, %v1664
        %v1666 = vpop.f32.mrf.mxu0
        %v1667 = vpop.f32.mrf.mxu0
        %v1668 = vadd.f32 %v1379, %v1667
        %v1669 = vpop.f32.mrf.mxu0
        %1670 = vmatprep.mubr.bf16.mxu0 0
        %1671 = vmatmul.mubr.bf16.gmra.mxu0 %v940
        %v1672 = vpop.f32.mrf.mxu0
        %v1673 = vadd.f32 %v1384, %v1672
        %v1674 = vpop.f32.mrf.mxu0
        %v1675 = vpop.f32.mrf.mxu0
        %v1676 = vadd.f32 %v1387, %v1675
        %v1677 = vpop.f32.mrf.mxu0
        %1678 = vmatprep.mubr.bf16.mxu0 0
        %1679 = vmatmul.mubr.bf16.gmra.mxu0 %v943
        %v1680 = vpop.f32.mrf.mxu0
        %v1681 = vadd.f32 %v1392, %v1680
        %v1682 = vpop.f32.mrf.mxu0
        %v1683 = vpop.f32.mrf.mxu0
        %v1684 = vadd.f32 %v1395, %v1683
        %v1685 = vpop.f32.mrf.mxu0
        %1686 = vmatprep.mubr.bf16.mxu0 0
        %1687 = vmatmul.mubr.bf16.gmra.mxu0 %v946
        %v1688 = vpop.f32.mrf.mxu0
        %v1689 = vadd.f32 %v1400, %v1688
        %v1690 = vpop.f32.mrf.mxu0
        %v1691 = vpop.f32.mrf.mxu0
        %v1692 = vadd.f32 %v1403, %v1691
        %v1693 = vpop.f32.mrf.mxu0
        %1694 = vmatprep.mubr.bf16.mxu0 0
        %1695 = vmatmul.mubr.bf16.gmra.mxu0 %v949
        %v1696 = vpop.f32.mrf.mxu0
        %v1697 = vadd.f32 %v1408, %v1696
        %v1698 = vpop.f32.mrf.mxu0
        %v1699 = vpop.f32.mrf.mxu0
        %v1700 = vadd.f32 %v1411, %v1699
        %v1701 = vpop.f32.mrf.mxu0
        %1702 = vmatprep.mubr.bf16.mxu0 0
        %1703 = vmatmul.mubr.bf16.gmra.mxu0 %v952
        %v1704 = vpop.f32.mrf.mxu0
        %v1705 = vadd.f32 %v1416, %v1704
        %v1706 = vpop.f32.mrf.mxu0
        %v1707 = vpop.f32.mrf.mxu0
        %v1708 = vadd.f32 %v1419, %v1707
        %v1709 = vpop.f32.mrf.mxu0
        %1710 = vmatprep.mubr.bf16.mxu0 0
        %1711 = vmatmul.mubr.bf16.gmra.mxu0 %v955
        %v1712 = vpop.f32.mrf.mxu0
        %v1713 = vadd.f32 %v1424, %v1712
        %v1714 = vpop.f32.mrf.mxu0
        %v1715 = vpop.f32.mrf.mxu0
        %v1716 = vadd.f32 %v1427, %v1715
        %v1717 = vpop.f32.mrf.mxu0
        %1718 = vmatprep.mubr.bf16.mxu0 0
        %1719 = vmatmul.mubr.bf16.gmra.mxu0 %v958
        %v1720 = vpop.f32.mrf.mxu0
        %v1721 = vadd.f32 %v1432, %v1720
        %v1722 = vpop.f32.mrf.mxu0
        %v1723 = vpop.f32.mrf.mxu0
        %v1724 = vadd.f32 %v1435, %v1723
        %v1725 = vpop.f32.mrf.mxu0
        %1726 = vmatprep.mubr.bf16.mxu0 0
        %1727 = vmatmul.mubr.bf16.gmra.mxu0 %v961
        %v1728 = vpop.f32.mrf.mxu0
        %v1729 = vadd.f32 %v1440, %v1728
        %v1730 = vpop.f32.mrf.mxu0
        %v1731 = vpop.f32.mrf.mxu0
        %v1732 = vadd.f32 %v1443, %v1731
        %v1733 = vpop.f32.mrf.mxu0
        %1734 = vmatprep.mubr.bf16.mxu0 0
        %1735 = vmatmul.mubr.bf16.gmra.mxu0 %v964
        %v1736 = vpop.f32.mrf.mxu0
        %v1737 = vadd.f32 %v1448, %v1736
        %v1738 = vpop.f32.mrf.mxu0
        %v1739 = vpop.f32.mrf.mxu0
        %v1740 = vadd.f32 %v1451, %v1739
        %v1741 = vpop.f32.mrf.mxu0
        %1742 = vmatprep.mubr.bf16.mxu0 0
        %1743 = vmatmul.mubr.bf16.gmra.mxu0 %v967
        %v1744 = vpop.f32.mrf.mxu0
        %v1745 = vadd.f32 %v1456, %v1744
        %v1746 = vpop.f32.mrf.mxu0
        %v1747 = vpop.f32.mrf.mxu0
        %v1748 = vadd.f32 %v1459, %v1747
        %v1749 = vpop.f32.mrf.mxu0
        %1750 = vmatprep.mubr.bf16.mxu0 0
        %1751 = vmatmul.mubr.bf16.gmra.mxu0 %v970
        %v1752 = vpop.f32.mrf.mxu0
        %v1753 = vadd.f32 %v1464, %v1752
        %v1754 = vpop.f32.mrf.mxu0
        %v1755 = vpop.f32.mrf.mxu0
        %v1756 = vadd.f32 %v1467, %v1755
        %v1757 = vpop.f32.mrf.mxu0
        %1758 = vmatprep.mubr.bf16.mxu0 0
        %1759 = vmatmul.mubr.bf16.gmra.mxu0 %v973
        %v1760 = vpop.f32.mrf.mxu0
        %v1761 = vadd.f32 %v1472, %v1760
        %v1762 = vpop.f32.mrf.mxu0
        %v1763 = vpop.f32.mrf.mxu0
        %v1764 = vadd.f32 %v1475, %v1763
        %v1765 = vpop.f32.mrf.mxu0
        %1766 = vmatprep.mubr.bf16.mxu0 0
        %1767 = vmatmul.mubr.bf16.gmra.mxu0 %v976
        %v1768 = vpop.f32.mrf.mxu0
        %v1769 = vadd.f32 %v1480, %v1768
        %v1770 = vpop.f32.mrf.mxu0
        %v1771 = vpop.f32.mrf.mxu0
        %v1772 = vadd.f32 %v1483, %v1771
        %v1773 = vpop.f32.mrf.mxu0
        %1774 = vmatprep.mubr.bf16.mxu0 0
        %1775 = vmatmul.mubr.bf16.gmra.mxu0 %v979
        %v1776 = vpop.f32.mrf.mxu0
        %v1777 = vadd.f32 %v1488, %v1776
        %v1778 = vpop.f32.mrf.mxu0
        %v1779 = vpop.f32.mrf.mxu0
        %v1780 = vadd.f32 %v1491, %v1779
        %v1781 = vpop.f32.mrf.mxu0
        %1782 = vmatprep.mubr.bf16.mxu0 0
        %1783 = vmatmul.mubr.bf16.gmra.mxu0 %v982
        %v1784 = vpop.f32.mrf.mxu0
        %v1785 = vadd.f32 %v1496, %v1784
        %v1786 = vpop.f32.mrf.mxu0
        %v1787 = vpop.f32.mrf.mxu0
        %v1788 = vadd.f32 %v1499, %v1787
        %v1789 = vpop.f32.mrf.mxu0
        %1790 = vmatprep.mubr.bf16.mxu0 0
        %1791 = vmatmul.mubr.bf16.gmra.mxu0 %v985
        %v1792 = vpop.f32.mrf.mxu0
        %v1793 = vadd.f32 %v1504, %v1792
        %v1794 = vpop.f32.mrf.mxu0
        %v1795 = vpop.f32.mrf.mxu0
        %v1796 = vadd.f32 %v1507, %v1795
        %v1797 = vpop.f32.mrf.mxu0
        %1798 = vmatprep.mubr.bf16.mxu0 0
        %1799 = vmatmul.mubr.bf16.gmra.mxu0 %v988
        %v1800 = vpop.f32.mrf.mxu0
        %v1801 = vadd.f32 %v1512, %v1800
        %v1802 = vpop.f32.mrf.mxu0
        %v1803 = vpop.f32.mrf.mxu0
        %v1804 = vadd.f32 %v1515, %v1803
        %v1805 = vpop.f32.mrf.mxu0
        %1806 = vdwg.mxu0
        %v1807 = vadd.f32 %v333, %v1553
        %v1808 = vadd.f32 %v334, %v1556
        %v1809 = vadd.f32 %v335, %v1561
        %v1810 = vadd.f32 %v336, %v1564
        %v1811 = vadd.f32 %v337, %v1569
        %v1812 = vadd.f32 %v338, %v1572
        %v1813 = vadd.f32 %v339, %v1577
        %v1814 = vadd.f32 %v340, %v1580
        %v1815 = vadd.f32 %v341, %v1585
        %v1816 = vadd.f32 %v342, %v1588
        %v1817 = vadd.f32 %v343, %v1593
        %v1818 = vadd.f32 %v344, %v1596
        %v1819 = vadd.f32 %v345, %v1601
        %v1820 = vadd.f32 %v346, %v1604
        %v1821 = vadd.f32 %v347, %v1609
        %v1822 = vadd.f32 %v348, %v1612
        %v1823 = vadd.f32 %v349, %v1617
        %v1824 = vadd.f32 %v350, %v1620
        %v1825 = vadd.f32 %v351, %v1625
        %v1826 = vadd.f32 %v352, %v1628
        %v1827 = vadd.f32 %v353, %v1633
        %v1828 = vadd.f32 %v354, %v1636
        %v1829 = vadd.f32 %v355, %v1641
        %v1830 = vadd.f32 %v356, %v1644
        %v1831 = vadd.f32 %v357, %v1649
        %v1832 = vadd.f32 %v358, %v1652
        %v1833 = vadd.f32 %v359, %v1657
        %v1834 = vadd.f32 %v360, %v1660
        %v1835 = vadd.f32 %v361, %v1665
        %v1836 = vadd.f32 %v362, %v1668
        %v1837 = vadd.f32 %v363, %v1673
        %v1838 = vadd.f32 %v364, %v1676
        %v1839 = vadd.f32 %v365, %v1681
        %v1840 = vadd.f32 %v366, %v1684
        %v1841 = vadd.f32 %v367, %v1689
        %v1842 = vadd.f32 %v368, %v1692
        %v1843 = vadd.f32 %v369, %v1697
        %v1844 = vadd.f32 %v370, %v1700
        %v1845 = vadd.f32 %v371, %v1705
        %v1846 = vadd.f32 %v372, %v1708
        %v1847 = vadd.f32 %v373, %v1713
        %v1848 = vadd.f32 %v374, %v1716
        %v1849 = vadd.f32 %v375, %v1721
        %v1850 = vadd.f32 %v376, %v1724
        %v1851 = vadd.f32 %v377, %v1729
        %v1852 = vadd.f32 %v378, %v1732
        %v1853 = vadd.f32 %v379, %v1737
        %v1854 = vadd.f32 %v380, %v1740
        %v1855 = vadd.f32 %v381, %v1745
        %v1856 = vadd.f32 %v382, %v1748
        %v1857 = vadd.f32 %v383, %v1753
        %v1858 = vadd.f32 %v384, %v1756
        %v1859 = vadd.f32 %v385, %v1761
        %v1860 = vadd.f32 %v386, %v1764
        %v1861 = vadd.f32 %v387, %v1769
        %v1862 = vadd.f32 %v388, %v1772
        %v1863 = vadd.f32 %v389, %v1777
        %v1864 = vadd.f32 %v390, %v1780
        %v1865 = vadd.f32 %v391, %v1785
        %v1866 = vadd.f32 %v392, %v1788
        %v1867 = vadd.f32 %v393, %v1793
        %v1868 = vadd.f32 %v394, %v1796
        %v1869 = vadd.f32 %v395, %v1801
        %v1870 = vadd.f32 %v396, %v1804
        %1871 = vst [vmem:[#allocation2] sm:$0xff] %v1807
        %1872 = vst [vmem:[#allocation2 + $0x8] sm:$0xff] %v1808
        %1873 = vst [vmem:[#allocation2 + $0x10] sm:$0xff] %v1809
        %1874 = vst [vmem:[#allocation2 + $0x18] sm:$0xff] %v1810
        %1875 = vst [vmem:[#allocation2 + $0x20] sm:$0xff] %v1811
        %1876 = vst [vmem:[#allocation2 + $0x28] sm:$0xff] %v1812
        %1877 = vst [vmem:[#allocation2 + $0x30] sm:$0xff] %v1813
        %1878 = vst [vmem:[#allocation2 + $0x38] sm:$0xff] %v1814
        %1879 = vst [vmem:[#allocation2 + $0x40] sm:$0xff] %v1815
        %1880 = vst [vmem:[#allocation2 + $0x48] sm:$0xff] %v1816
        %1881 = vst [vmem:[#allocation2 + $0x50] sm:$0xff] %v1817
        %1882 = vst [vmem:[#allocation2 + $0x58] sm:$0xff] %v1818
        %1883 = vst [vmem:[#allocation2 + $0x60] sm:$0xff] %v1819
        %1884 = vst [vmem:[#allocation2 + $0x68] sm:$0xff] %v1820
        %1885 = vst [vmem:[#allocation2 + $0x70] sm:$0xff] %v1821
        %1886 = vst [vmem:[#allocation2 + $0x78] sm:$0xff] %v1822
        %1887 = vst [vmem:[#allocation2 + $0x80] sm:$0xff] %v1823
        %1888 = vst [vmem:[#allocation2 + $0x88] sm:$0xff] %v1824
        %1889 = vst [vmem:[#allocation2 + $0x90] sm:$0xff] %v1825
        %1890 = vst [vmem:[#allocation2 + $0x98] sm:$0xff] %v1826
        %1891 = vst [vmem:[#allocation2 + $0xa0] sm:$0xff] %v1827
        %1892 = vst [vmem:[#allocation2 + $0xa8] sm:$0xff] %v1828
        %1893 = vst [vmem:[#allocation2 + $0xb0] sm:$0xff] %v1829
        %1894 = vst [vmem:[#allocation2 + $0xb8] sm:$0xff] %v1830
        %1895 = vst [vmem:[#allocation2 + $0xc0] sm:$0xff] %v1831
        %1896 = vst [vmem:[#allocation2 + $0xc8] sm:$0xff] %v1832
        %1897 = vst [vmem:[#allocation2 + $0xd0] sm:$0xff] %v1833
        %1898 = vst [vmem:[#allocation2 + $0xd8] sm:$0xff] %v1834
        %1899 = vst [vmem:[#allocation2 + $0xe0] sm:$0xff] %v1835
        %1900 = vst [vmem:[#allocation2 + $0xe8] sm:$0xff] %v1836
        %1901 = vst [vmem:[#allocation2 + $0xf0] sm:$0xff] %v1837
        %1902 = vst [vmem:[#allocation2 + $0xf8] sm:$0xff] %v1838
        %1903 = vst [vmem:[#allocation2 + $0x100] sm:$0xff] %v1839
        %1904 = vst [vmem:[#allocation2 + $0x108] sm:$0xff] %v1840
        %1905 = vst [vmem:[#allocation2 + $0x110] sm:$0xff] %v1841
        %1906 = vst [vmem:[#allocation2 + $0x118] sm:$0xff] %v1842
        %1907 = vst [vmem:[#allocation2 + $0x120] sm:$0xff] %v1843
        %1908 = vst [vmem:[#allocation2 + $0x128] sm:$0xff] %v1844
        %1909 = vst [vmem:[#allocation2 + $0x130] sm:$0xff] %v1845
        %1910 = vst [vmem:[#allocation2 + $0x138] sm:$0xff] %v1846
        %1911 = vst [vmem:[#allocation2 + $0x140] sm:$0xff] %v1847
        %1912 = vst [vmem:[#allocation2 + $0x148] sm:$0xff] %v1848
        %1913 = vst [vmem:[#allocation2 + $0x150] sm:$0xff] %v1849
        %1914 = vst [vmem:[#allocation2 + $0x158] sm:$0xff] %v1850
        %1915 = vst [vmem:[#allocation2 + $0x160] sm:$0xff] %v1851
        %1916 = vst [vmem:[#allocation2 + $0x168] sm:$0xff] %v1852
        %1917 = vst [vmem:[#allocation2 + $0x170] sm:$0xff] %v1853
        %1918 = vst [vmem:[#allocation2 + $0x178] sm:$0xff] %v1854
        %1919 = vst [vmem:[#allocation2 + $0x180] sm:$0xff] %v1855
        %1920 = vst [vmem:[#allocation2 + $0x188] sm:$0xff] %v1856
        %1921 = vst [vmem:[#allocation2 + $0x190] sm:$0xff] %v1857
        %1922 = vst [vmem:[#allocation2 + $0x198] sm:$0xff] %v1858
        %1923 = vst [vmem:[#allocation2 + $0x1a0] sm:$0xff] %v1859
        %1924 = vst [vmem:[#allocation2 + $0x1a8] sm:$0xff] %v1860
        %1925 = vst [vmem:[#allocation2 + $0x1b0] sm:$0xff] %v1861
        %1926 = vst [vmem:[#allocation2 + $0x1b8] sm:$0xff] %v1862
        %1927 = vst [vmem:[#allocation2 + $0x1c0] sm:$0xff] %v1863
        %1928 = vst [vmem:[#allocation2 + $0x1c8] sm:$0xff] %v1864
        %1929 = vst [vmem:[#allocation2 + $0x1d0] sm:$0xff] %v1865
        %1930 = vst [vmem:[#allocation2 + $0x1d8] sm:$0xff] %v1866
        %1931 = vst [vmem:[#allocation2 + $0x1e0] sm:$0xff] %v1867
        %1932 = vst [vmem:[#allocation2 + $0x1e8] sm:$0xff] %v1868
        %1933 = vst [vmem:[#allocation2 + $0x1f0] sm:$0xff] %v1869
        %1934 = vst [vmem:[#allocation2 + $0x1f8] sm:$0xff] %v1870
        // Predicated region
        $region49: #{tpu_custom_call.1} parent=31 // pred_check
          %p1935 = pneg %p265
        $region50: #{tpu_custom_call.1} parent=31 // pred_check_branch
          %1937 = sbr.rel (%p1935) target = $region52
        $region51: #{tpu_custom_call.1} parent=31 // pred_region
          %v1938 = vld [vmem:[#allocation2] sm:$0xff]
          %v1939 = vld [vmem:[#allocation2 + $0x8] sm:$0xff]
          %v1940 = vld [vmem:[#allocation2 + $0x10] sm:$0xff]
          %v1941 = vld [vmem:[#allocation2 + $0x18] sm:$0xff]
          %v1942 = vld [vmem:[#allocation2 + $0x20] sm:$0xff]
          %v1943 = vld [vmem:[#allocation2 + $0x28] sm:$0xff]
          %v1944 = vld [vmem:[#allocation2 + $0x30] sm:$0xff]
          %v1945 = vld [vmem:[#allocation2 + $0x38] sm:$0xff]
          %v1946 = vld [vmem:[#allocation2 + $0x40] sm:$0xff]
          %v1947 = vld [vmem:[#allocation2 + $0x48] sm:$0xff]
          %v1948 = vld [vmem:[#allocation2 + $0x50] sm:$0xff]
          %v1949 = vld [vmem:[#allocation2 + $0x58] sm:$0xff]
          %v1950 = vld [vmem:[#allocation2 + $0x60] sm:$0xff]
          %v1951 = vld [vmem:[#allocation2 + $0x68] sm:$0xff]
          %v1952 = vld [vmem:[#allocation2 + $0x70] sm:$0xff]
          %v1953 = vld [vmem:[#allocation2 + $0x78] sm:$0xff]
          %v1954 = vld [vmem:[#allocation2 + $0x80] sm:$0xff]
          %v1955 = vld [vmem:[#allocation2 + $0x88] sm:$0xff]
          %v1956 = vld [vmem:[#allocation2 + $0x90] sm:$0xff]
          %v1957 = vld [vmem:[#allocation2 + $0x98] sm:$0xff]
          %v1958 = vld [vmem:[#allocation2 + $0xa0] sm:$0xff]
          %v1959 = vld [vmem:[#allocation2 + $0xa8] sm:$0xff]
          %v1960 = vld [vmem:[#allocation2 + $0xb0] sm:$0xff]
          %v1961 = vld [vmem:[#allocation2 + $0xb8] sm:$0xff]
          %v1962 = vld [vmem:[#allocation2 + $0xc0] sm:$0xff]
          %v1963 = vld [vmem:[#allocation2 + $0xc8] sm:$0xff]
          %v1964 = vld [vmem:[#allocation2 + $0xd0] sm:$0xff]
          %v1965 = vld [vmem:[#allocation2 + $0xd8] sm:$0xff]
          %v1966 = vld [vmem:[#allocation2 + $0xe0] sm:$0xff]
          %v1967 = vld [vmem:[#allocation2 + $0xe8] sm:$0xff]
          %v1968 = vld [vmem:[#allocation2 + $0xf0] sm:$0xff]
          %v1969 = vld [vmem:[#allocation2 + $0xf8] sm:$0xff]
          %v1970 = vld [vmem:[#allocation2 + $0x100] sm:$0xff]
          %v1971 = vld [vmem:[#allocation2 + $0x108] sm:$0xff]
          %v1972 = vld [vmem:[#allocation2 + $0x110] sm:$0xff]
          %v1973 = vld [vmem:[#allocation2 + $0x118] sm:$0xff]
          %v1974 = vld [vmem:[#allocation2 + $0x120] sm:$0xff]
          %v1975 = vld [vmem:[#allocation2 + $0x128] sm:$0xff]
          %v1976 = vld [vmem:[#allocation2 + $0x130] sm:$0xff]
          %v1977 = vld [vmem:[#allocation2 + $0x138] sm:$0xff]
          %v1978 = vld [vmem:[#allocation2 + $0x140] sm:$0xff]
          %v1979 = vld [vmem:[#allocation2 + $0x148] sm:$0xff]
          %v1980 = vld [vmem:[#allocation2 + $0x150] sm:$0xff]
          %v1981 = vld [vmem:[#allocation2 + $0x158] sm:$0xff]
          %v1982 = vld [vmem:[#allocation2 + $0x160] sm:$0xff]
          %v1983 = vld [vmem:[#allocation2 + $0x168] sm:$0xff]
          %v1984 = vld [vmem:[#allocation2 + $0x170] sm:$0xff]
          %v1985 = vld [vmem:[#allocation2 + $0x178] sm:$0xff]
          %v1986 = vld [vmem:[#allocation2 + $0x180] sm:$0xff]
          %v1987 = vld [vmem:[#allocation2 + $0x188] sm:$0xff]
          %v1988 = vld [vmem:[#allocation2 + $0x190] sm:$0xff]
          %v1989 = vld [vmem:[#allocation2 + $0x198] sm:$0xff]
          %v1990 = vld [vmem:[#allocation2 + $0x1a0] sm:$0xff]
          %v1991 = vld [vmem:[#allocation2 + $0x1a8] sm:$0xff]
          %v1992 = vld [vmem:[#allocation2 + $0x1b0] sm:$0xff]
          %v1993 = vld [vmem:[#allocation2 + $0x1b8] sm:$0xff]
          %v1994 = vld [vmem:[#allocation2 + $0x1c0] sm:$0xff]
          %v1995 = vld [vmem:[#allocation2 + $0x1c8] sm:$0xff]
          %v1996 = vld [vmem:[#allocation2 + $0x1d0] sm:$0xff]
          %v1997 = vld [vmem:[#allocation2 + $0x1d8] sm:$0xff]
          %v1998 = vld [vmem:[#allocation2 + $0x1e0] sm:$0xff]
          %v1999 = vld [vmem:[#allocation2 + $0x1e8] sm:$0xff]
          %v2000 = vld [vmem:[#allocation2 + $0x1f0] sm:$0xff]
          %v2001 = vld [vmem:[#allocation2 + $0x1f8] sm:$0xff]
          %v2002 = vld [vmem:[#allocation8] sm:$0x1]
          %v2004 = vlaneseq
          %v2005 = vshrl.u32 %v2004, 7
          %v2006 = vsub.s32 0, %v2005
          %v2007 = vrot.slane %v2002, %v2006
          %v2009 = vadd.f32 %v1938, %v2007
          %v2010 = vadd.f32 %v1939, %v2007
          %v2011 = vadd.f32 %v1940, %v2007
          %v2012 = vadd.f32 %v1941, %v2007
          %v2013 = vadd.f32 %v1942, %v2007
          %v2014 = vadd.f32 %v1943, %v2007
          %v2015 = vadd.f32 %v1944, %v2007
          %v2016 = vadd.f32 %v1945, %v2007
          %v2017 = vadd.f32 %v1946, %v2007
          %v2018 = vadd.f32 %v1947, %v2007
          %v2019 = vadd.f32 %v1948, %v2007
          %v2020 = vadd.f32 %v1949, %v2007
          %v2021 = vadd.f32 %v1950, %v2007
          %v2022 = vadd.f32 %v1951, %v2007
          %v2023 = vadd.f32 %v1952, %v2007
          %v2024 = vadd.f32 %v1953, %v2007
          %v2025 = vadd.f32 %v1954, %v2007
          %v2026 = vadd.f32 %v1955, %v2007
          %v2027 = vadd.f32 %v1956, %v2007
          %v2028 = vadd.f32 %v1957, %v2007
          %v2029 = vadd.f32 %v1958, %v2007
          %v2030 = vadd.f32 %v1959, %v2007
          %v2031 = vadd.f32 %v1960, %v2007
          %v2032 = vadd.f32 %v1961, %v2007
          %v2033 = vadd.f32 %v1962, %v2007
          %v2034 = vadd.f32 %v1963, %v2007
          %v2035 = vadd.f32 %v1964, %v2007
          %v2036 = vadd.f32 %v1965, %v2007
          %v2037 = vadd.f32 %v1966, %v2007
          %v2038 = vadd.f32 %v1967, %v2007
          %v2039 = vadd.f32 %v1968, %v2007
          %v2040 = vadd.f32 %v1969, %v2007
          %v2041 = vadd.f32 %v1970, %v2007
          %v2042 = vadd.f32 %v1971, %v2007
          %v2043 = vadd.f32 %v1972, %v2007
          %v2044 = vadd.f32 %v1973, %v2007
          %v2045 = vadd.f32 %v1974, %v2007
          %v2046 = vadd.f32 %v1975, %v2007
          %v2047 = vadd.f32 %v1976, %v2007
          %v2048 = vadd.f32 %v1977, %v2007
          %v2049 = vadd.f32 %v1978, %v2007
          %v2050 = vadd.f32 %v1979, %v2007
          %v2051 = vadd.f32 %v1980, %v2007
          %v2052 = vadd.f32 %v1981, %v2007
          %v2053 = vadd.f32 %v1982, %v2007
          %v2054 = vadd.f32 %v1983, %v2007
          %v2055 = vadd.f32 %v1984, %v2007
          %v2056 = vadd.f32 %v1985, %v2007
          %v2057 = vadd.f32 %v1986, %v2007
          %v2058 = vadd.f32 %v1987, %v2007
          %v2059 = vadd.f32 %v1988, %v2007
          %v2060 = vadd.f32 %v1989, %v2007
          %v2061 = vadd.f32 %v1990, %v2007
          %v2062 = vadd.f32 %v1991, %v2007
          %v2063 = vadd.f32 %v1992, %v2007
          %v2064 = vadd.f32 %v1993, %v2007
          %v2065 = vadd.f32 %v1994, %v2007
          %v2066 = vadd.f32 %v1995, %v2007
          %v2067 = vadd.f32 %v1996, %v2007
          %v2068 = vadd.f32 %v1997, %v2007
          %v2069 = vadd.f32 %v1998, %v2007
          %v2070 = vadd.f32 %v1999, %v2007
          %v2071 = vadd.f32 %v2000, %v2007
          %v2072 = vadd.f32 %v2001, %v2007
          %v2073 = vmax.f32 %v2009, 0.0
          %v2074 = vmax.f32 %v2010, 0.0
          %v2075 = vmax.f32 %v2011, 0.0
          %v2076 = vmax.f32 %v2012, 0.0
          %v2077 = vmax.f32 %v2013, 0.0
          %v2078 = vmax.f32 %v2014, 0.0
          %v2079 = vmax.f32 %v2015, 0.0
          %v2080 = vmax.f32 %v2016, 0.0
          %v2081 = vmax.f32 %v2017, 0.0
          %v2082 = vmax.f32 %v2018, 0.0
          %v2083 = vmax.f32 %v2019, 0.0
          %v2084 = vmax.f32 %v2020, 0.0
          %v2085 = vmax.f32 %v2021, 0.0
          %v2086 = vmax.f32 %v2022, 0.0
          %v2087 = vmax.f32 %v2023, 0.0
          %v2088 = vmax.f32 %v2024, 0.0
          %v2089 = vmax.f32 %v2025, 0.0
          %v2090 = vmax.f32 %v2026, 0.0
          %v2091 = vmax.f32 %v2027, 0.0
          %v2092 = vmax.f32 %v2028, 0.0
          %v2093 = vmax.f32 %v2029, 0.0
          %v2094 = vmax.f32 %v2030, 0.0
          %v2095 = vmax.f32 %v2031, 0.0
          %v2096 = vmax.f32 %v2032, 0.0
          %v2097 = vmax.f32 %v2033, 0.0
          %v2098 = vmax.f32 %v2034, 0.0
          %v2099 = vmax.f32 %v2035, 0.0
          %v2100 = vmax.f32 %v2036, 0.0
          %v2101 = vmax.f32 %v2037, 0.0
          %v2102 = vmax.f32 %v2038, 0.0
          %v2103 = vmax.f32 %v2039, 0.0
          %v2104 = vmax.f32 %v2040, 0.0
          %v2105 = vmax.f32 %v2041, 0.0
          %v2106 = vmax.f32 %v2042, 0.0
          %v2107 = vmax.f32 %v2043, 0.0
          %v2108 = vmax.f32 %v2044, 0.0
          %v2109 = vmax.f32 %v2045, 0.0
          %v2110 = vmax.f32 %v2046, 0.0
          %v2111 = vmax.f32 %v2047, 0.0
          %v2112 = vmax.f32 %v2048, 0.0
          %v2113 = vmax.f32 %v2049, 0.0
          %v2114 = vmax.f32 %v2050, 0.0
          %v2115 = vmax.f32 %v2051, 0.0
          %v2116 = vmax.f32 %v2052, 0.0
          %v2117 = vmax.f32 %v2053, 0.0
          %v2118 = vmax.f32 %v2054, 0.0
          %v2119 = vmax.f32 %v2055, 0.0
          %v2120 = vmax.f32 %v2056, 0.0
          %v2121 = vmax.f32 %v2057, 0.0
          %v2122 = vmax.f32 %v2058, 0.0
          %v2123 = vmax.f32 %v2059, 0.0
          %v2124 = vmax.f32 %v2060, 0.0
          %v2125 = vmax.f32 %v2061, 0.0
          %v2126 = vmax.f32 %v2062, 0.0
          %v2127 = vmax.f32 %v2063, 0.0
          %v2128 = vmax.f32 %v2064, 0.0
          %v2129 = vmax.f32 %v2065, 0.0
          %v2130 = vmax.f32 %v2066, 0.0
          %v2131 = vmax.f32 %v2067, 0.0
          %v2132 = vmax.f32 %v2068, 0.0
          %v2133 = vmax.f32 %v2069, 0.0
          %v2134 = vmax.f32 %v2070, 0.0
          %v2135 = vmax.f32 %v2071, 0.0
          %v2136 = vmax.f32 %v2072, 0.0
          %2137 = vst [vmem:[%s259] sm:$0xff] %v2073
          %2138 = vst [vmem:[%s259 + $0x8] sm:$0xff] %v2074
          %2139 = vst [vmem:[%s259 + $0x10] sm:$0xff] %v2075
          %2140 = vst [vmem:[%s259 + $0x18] sm:$0xff] %v2076
          %2141 = vst [vmem:[%s259 + $0x20] sm:$0xff] %v2077
          %2142 = vst [vmem:[%s259 + $0x28] sm:$0xff] %v2078
          %2143 = vst [vmem:[%s259 + $0x30] sm:$0xff] %v2079
          %2144 = vst [vmem:[%s259 + $0x38] sm:$0xff] %v2080
          %2145 = vst [vmem:[%s259 + $0x40] sm:$0xff] %v2081
          %2146 = vst [vmem:[%s259 + $0x48] sm:$0xff] %v2082
          %2147 = vst [vmem:[%s259 + $0x50] sm:$0xff] %v2083
          %2148 = vst [vmem:[%s259 + $0x58] sm:$0xff] %v2084
          %2149 = vst [vmem:[%s259 + $0x60] sm:$0xff] %v2085
          %2150 = vst [vmem:[%s259 + $0x68] sm:$0xff] %v2086
          %2151 = vst [vmem:[%s259 + $0x70] sm:$0xff] %v2087
          %2152 = vst [vmem:[%s259 + $0x78] sm:$0xff] %v2088
          %2153 = vst [vmem:[%s259 + $0x80] sm:$0xff] %v2089
          %2154 = vst [vmem:[%s259 + $0x88] sm:$0xff] %v2090
          %2155 = vst [vmem:[%s259 + $0x90] sm:$0xff] %v2091
          %2156 = vst [vmem:[%s259 + $0x98] sm:$0xff] %v2092
          %2157 = vst [vmem:[%s259 + $0xa0] sm:$0xff] %v2093
          %2158 = vst [vmem:[%s259 + $0xa8] sm:$0xff] %v2094
          %2159 = vst [vmem:[%s259 + $0xb0] sm:$0xff] %v2095
          %2160 = vst [vmem:[%s259 + $0xb8] sm:$0xff] %v2096
          %2161 = vst [vmem:[%s259 + $0xc0] sm:$0xff] %v2097
          %2162 = vst [vmem:[%s259 + $0xc8] sm:$0xff] %v2098
          %2163 = vst [vmem:[%s259 + $0xd0] sm:$0xff] %v2099
          %2164 = vst [vmem:[%s259 + $0xd8] sm:$0xff] %v2100
          %2165 = vst [vmem:[%s259 + $0xe0] sm:$0xff] %v2101
          %2166 = vst [vmem:[%s259 + $0xe8] sm:$0xff] %v2102
          %2167 = vst [vmem:[%s259 + $0xf0] sm:$0xff] %v2103
          %2168 = vst [vmem:[%s259 + $0xf8] sm:$0xff] %v2104
          %2169 = vst [vmem:[%s259 + $0x100] sm:$0xff] %v2105
          %2170 = vst [vmem:[%s259 + $0x108] sm:$0xff] %v2106
          %2171 = vst [vmem:[%s259 + $0x110] sm:$0xff] %v2107
          %2172 = vst [vmem:[%s259 + $0x118] sm:$0xff] %v2108
          %2173 = vst [vmem:[%s259 + $0x120] sm:$0xff] %v2109
          %2174 = vst [vmem:[%s259 + $0x128] sm:$0xff] %v2110
          %2175 = vst [vmem:[%s259 + $0x130] sm:$0xff] %v2111
          %2176 = vst [vmem:[%s259 + $0x138] sm:$0xff] %v2112
          %2177 = vst [vmem:[%s259 + $0x140] sm:$0xff] %v2113
          %2178 = vst [vmem:[%s259 + $0x148] sm:$0xff] %v2114
          %2179 = vst [vmem:[%s259 + $0x150] sm:$0xff] %v2115
          %2180 = vst [vmem:[%s259 + $0x158] sm:$0xff] %v2116
          %2181 = vst [vmem:[%s259 + $0x160] sm:$0xff] %v2117
          %2182 = vst [vmem:[%s259 + $0x168] sm:$0xff] %v2118
          %2183 = vst [vmem:[%s259 + $0x170] sm:$0xff] %v2119
          %2184 = vst [vmem:[%s259 + $0x178] sm:$0xff] %v2120
          %2185 = vst [vmem:[%s259 + $0x180] sm:$0xff] %v2121
          %2186 = vst [vmem:[%s259 + $0x188] sm:$0xff] %v2122
          %2187 = vst [vmem:[%s259 + $0x190] sm:$0xff] %v2123
          %2188 = vst [vmem:[%s259 + $0x198] sm:$0xff] %v2124
          %2189 = vst [vmem:[%s259 + $0x1a0] sm:$0xff] %v2125
          %2190 = vst [vmem:[%s259 + $0x1a8] sm:$0xff] %v2126
          %2191 = vst [vmem:[%s259 + $0x1b0] sm:$0xff] %v2127
          %2192 = vst [vmem:[%s259 + $0x1b8] sm:$0xff] %v2128
          %2193 = vst [vmem:[%s259 + $0x1c0] sm:$0xff] %v2129
          %2194 = vst [vmem:[%s259 + $0x1c8] sm:$0xff] %v2130
          %2195 = vst [vmem:[%s259 + $0x1d0] sm:$0xff] %v2131
          %2196 = vst [vmem:[%s259 + $0x1d8] sm:$0xff] %v2132
          %2197 = vst [vmem:[%s259 + $0x1e0] sm:$0xff] %v2133
          %2198 = vst [vmem:[%s259 + $0x1e8] sm:$0xff] %v2134
          %2199 = vst [vmem:[%s259 + $0x1f0] sm:$0xff] %v2135
          %2200 = vst [vmem:[%s259 + $0x1f8] sm:$0xff] %v2136
        $region52: #{tpu_custom_call.1} parent=31 // pred_fallthru
          _
        %s2201 = sand.u32 %s132, 1
        %s2202 = scalar_lea.sflag [#allocation5], %s2201
        %s2203 = sand.u32 %s132, 1
        %s2204 = smul.addr %s2203, 512
        %s2205 = scalar_lea.vmem [#allocation9], %s2204
        // Predicated region
        $region53: #{tpu_custom_call.1} parent=31 // pred_check
          %p2206 = pneg %p142
        $region54: #{tpu_custom_call.1} parent=31 // pred_check_branch
          %2208 = sbr.rel (%p2206) target = $region56
        $region55: #{tpu_custom_call.1} parent=31 // pred_region
          %s2209 = smul.u32 64, %s26
          %s2211 = ssub.s32 8192, 8192
          %2212 = vsyncadd %s2202, %s2211
          %s2213 = sadd.s32 %s27, %s2209
          %s2214 = smul.addr %s2213, 128
          %s2215 = scalar_lea.hbm %s3, %s2214
          %s2216 = sshll.u32 %s2205, 4
          %s2217 = int_to_ptr.vmem [resolvable:$true] %s2216
          %2222 = dma.vmem_to_hbm [thread:$0]  %s2217, 8192, %s2215, %s2202, 128, 128, 8
        $region56: #{tpu_custom_call.1} parent=31 // pred_fallthru
          _
      $region32: #{tpu_custom_call.1} parent=5 // pred_fallthru
        _
      %p2223 = scmp.le.s32.totalorder 2, %s16
      // Predicated region
      $region57: #{tpu_custom_call.1} parent=5 // pred_check
        %p2224 = pneg %p2223
      $region58: #{tpu_custom_call.1} parent=5 // pred_check_branch
        %2226 = sbr.rel (%p2224) target = $region60
      $region59: #{tpu_custom_call.1} parent=5 // pred_region
        %s2227 = ssub.s32 %s16, 2
        // Predicated region
        $region61: #{tpu_custom_call.1} parent=59 // pred_check
          %p2228 = pneg %p148
        $region62: #{tpu_custom_call.1} parent=59 // pred_check_branch
          %2230 = sbr.rel (%p2228) target = $region64
        $region63: #{tpu_custom_call.1} parent=59 // pred_region
          %s2231 = sand.u32 %s133, 1
          %s2232 = scalar_lea.sflag [#allocation5], %s2231
          %s2233 = sand.u32 %s133, 1
          %s2234 = smul.addr %s2233, 512
          %s2235 = scalar_lea.vmem [#allocation9], %s2234
          %2236 = dma.done %s2232, 8192
        $region64: #{tpu_custom_call.1} parent=59 // pred_fallthru
          _
      $region60: #{tpu_custom_call.1} parent=5 // pred_fallthru
        _
    $region6: #{tpu_custom_call.1} parent=1 // loop_footer
      %s20 = sadd.s32 1, %s16
    $region7: #{tpu_custom_call.1} parent=1 // loop_footer_branch
      %15 = sbr.rel target = $region3
    $region8: #{tpu_custom_call.1} parent=1 // loop_exit
      _
    %2237 = vsyncpa [#allocation4], 1
    %s2238 = scalar_lea.sflag [#allocation4], 1
    %2239 = vsyncpa %s2238, 1
    %2240 = vsyncpa [#allocation7], 1
    %2241 = vsyncpa [#allocation5], 1
    %s2242 = scalar_lea.sflag [#allocation5], 1
    %2243 = vsyncpa %s2242, 1

</llo_original>
